<compile_context>
chip_gen: v5e
topology: v5e:2x2
jax: 0.10.0
libtpu: 0.0.40
codegen_flags: <defaults>
</compile_context>

<pallas_src>
import functools
import math

import jax
import jax.numpy as jnp
from jax.experimental import pallas as pl
from jax.experimental.pallas import tpu as pltpu


def _patch_merging_kernel(x_ref, wt_ref, wb_ref, bias_ref, o_ref, *,
                          eps, inv_4c, mm_dtype):
    # x_ref:    (t, 2, W2, 2C) -- dim 1 is the input-row parity (dh); channels
    #                             are laid out [dw=0 | dw=1], so the even rows
    #                             hold [x0|x2] and the odd rows hold [x1|x3].
    # wt_ref:   (2C, 2C)        -- gamma-folded projection rows for [x0|x2]
    # wb_ref:   (2C, 2C)        -- gamma-folded projection rows for [x1|x3]
    # bias_ref: (1, 2C)         -- beta @ W (f32)
    # o_ref:    (t, W2, 2C)
    t, _, w2, two_c = x_ref.shape
    f32 = jnp.float32

    top = x_ref[:, 0]            # (t, W2, 2C)  even input rows
    bot = x_ref[:, 1]            # (t, W2, 2C)  odd input rows

    # LayerNorm statistics over the virtual 4C axis via f32-accumulated
    # moments (no full f32 copies of the slabs needed just for the stats).
    s1 = (jnp.sum(top, axis=-1, keepdims=True, dtype=f32)
          + jnp.sum(bot, axis=-1, keepdims=True, dtype=f32))
    s2 = (jnp.sum(jnp.square(top), axis=-1, keepdims=True, dtype=f32)
          + jnp.sum(jnp.square(bot), axis=-1, keepdims=True, dtype=f32))
    mean = s1 * inv_4c
    var = jnp.maximum(s2 * inv_4c - mean * mean, 0.0)
    rstd = jax.lax.rsqrt(var + eps)

    # (xhat*gamma + beta) @ W  ==  rstd * ((x - mean) @ (gamma*W)) + beta @ W
    ct = (top.astype(f32) - mean).astype(mm_dtype)
    cb = (bot.astype(f32) - mean).astype(mm_dtype)

    # Flatten (t, W2, 2C) -> (t*W2, 2C) for the MXU.  The wrapper rounds t so
    # t*W2 is sublane/MXU friendly; when W2 itself is a sublane multiple this
    # reshape is a pure relabel (no repack).
    rows = t * w2
    acc = jnp.dot(ct.reshape(rows, two_c), wt_ref[...],
                  preferred_element_type=f32)
    acc = acc + jnp.dot(cb.reshape(rows, two_c), wb_ref[...],
                        preferred_element_type=f32)

    out = rstd * acc.reshape(t, w2, two_c) + bias_ref[...].astype(f32)
    o_ref[...] = out.astype(o_ref.dtype)


def _vmem_capacity_bytes():
    """Per-TensorCore VMEM capacity; conservative v7x default on failure."""
    try:
        cap = int(pltpu.get_tpu_info().vmem_capacity_bytes)
        if cap > 0:
            return cap
    except Exception:
        pass
    return 64 * 1024 * 1024


def _choose_block_rows(bh2, w2, c, in_item, out_item, mm_item, w_item,
                       sublane, budget, target_merged_rows,
                       single_buffer_weights):
    """Pick t (rows of the B*H/2 axis per grid step) under the VMEM budget."""
    two_c = 2 * c
    slab = w2 * two_c                       # elements per parity slab per row
    per_row = slab * (
        2 * (2 * in_item)                   # (t,2,W2,2C) input, double-buffered
        + 2 * out_item                      # output block, double-buffered
        + 2 * mm_item                       # ct / cb matmul operands
        + 4 * 4                             # ~4 f32 slabs: centering/acc/out temps
    )
    wbuf = 1 if single_buffer_weights else 2
    fixed = wbuf * 2 * (two_c * two_c) * w_item + 8 * two_c * 4

    avail = max(budget - fixed, per_row)
    t = max(1, min(bh2, avail // per_row))

    # A few MiB of HBM traffic per step amortizes the ~0.35us/step overhead
    # (target_merged_rows is generation dependent: bigger on v7x's fast HBM).
    t = min(t, max(1, target_merged_rows // max(w2, 1)))

    # Keep >= 2 grid steps so the "parallel" axis can shard over 2 TensorCores.
    if bh2 >= 2:
        t = min(t, pl.cdiv(bh2, 2))

    # Prefer an even number of grid steps (balanced megacore split on v7x).
    steps = pl.cdiv(bh2, t)
    if steps > 1 and steps % 2 == 1:
        t = max(1, pl.cdiv(bh2, steps + 1))

    # Round t down so t*W2 is a multiple of the sublane count (and of 256 for
    # large blocks): alignment-friendly flatten, no padded sublanes on the MXU.
    def _round_down(t_val, mult):
        k = mult // math.gcd(w2, mult)
        return (t_val // k) * k if t_val >= k else t_val

    if t * w2 >= 1024:
        t = max(_round_down(t, 256), _round_down(t, sublane), 1)
    else:
        t = max(_round_down(t, sublane), 1)
    return int(t)


def patch_merging(x, input_resolution, gamma, beta, w_red, *, eps=1e-5,
                  matmul_dtype=None, vmem_budget_bytes=None,
                  vmem_limit_bytes=None):
    """x: (B, H*W, C) -> (B, H*W/4, 2C), matching the PyTorch PatchMerging."""
    H, W = input_resolution
    B, L, C = x.shape
    assert L == H * W, "input feature has wrong size"
    assert H % 2 == 0 and W % 2 == 0, f"x size ({H}*{W}) are not even."

    H2, W2 = H // 2, W // 2
    BH2 = B * H2
    two_c = 2 * C
    four_c = 4 * C

    # Free row-major relabel: (B, H*W, C) -> (B*H2, 2, W2, 2C).
    # dim1 = row parity (dh); last dim = [dw=0 channels | dw=1 channels].
    xr = x.reshape(BH2, 2, W2, two_c)

    # Matmul dtype: weights' dtype by default.  On v5e (bf16-only MXU) pass
    # matmul_dtype=jnp.bfloat16 for f32 inputs to stay bandwidth-bound.
    mm_dtype = (jnp.dtype(matmul_dtype) if matmul_dtype is not None
                else jnp.dtype(w_red.dtype))

    # Fold the LayerNorm affine into the projection (in f32) and permute the
    # rows of W from the reference [x0,x1,x2,x3] order into the slab order
    # top=[x0|x2], bot=[x1|x3].
    g32 = gamma.astype(jnp.float32)
    w32 = w_red.astype(jnp.float32)
    wg = g32[:, None] * w32                                      # (4C, 2C)
    bias = (beta.astype(jnp.float32) @ w32).reshape(1, two_c)    # (1, 2C) f32
    wt = jnp.concatenate([wg[0:C], wg[2 * C:3 * C]], axis=0).astype(mm_dtype)
    wb = jnp.concatenate([wg[C:2 * C], wg[3 * C:4 * C]], axis=0).astype(mm_dtype)

    # Generation-aware VMEM policy (64 MiB/TC on v7x, 128 MiB on v5e/v6e).
    cap = _vmem_capacity_bytes()
    if vmem_budget_bytes is None:
        vmem_budget_bytes = min(cap // 2, 64 * 1024 * 1024)
    if vmem_limit_bytes is None:
        vmem_limit_bytes = min(max((cap * 3) // 4, vmem_budget_bytes + (8 << 20)),
                               cap - (8 << 20))
    # v7x has less VMEM but ~3.2 TB/s HBM: use bigger steps to hide overhead.
    target_merged_rows = 8192 if cap <= 96 * 1024 * 1024 else 4096

    in_item = jnp.dtype(x.dtype).itemsize
    out_item = in_item
    mm_item = jnp.dtype(mm_dtype).itemsize
    sublane = max(1, 32 // max(1, in_item))   # 8 f32 / 16 bf16 / 32 int8

    kernel_fn = functools.partial(_patch_merging_kernel, eps=eps,
                                  inv_4c=1.0 / four_c, mm_dtype=mm_dtype)

    def _run(single_buffer_weights):
        t = _choose_block_rows(BH2, W2, C, in_item, out_item, mm_item, mm_item,
                               sublane, vmem_budget_bytes, target_merged_rows,
                               single_buffer_weights)
        if single_buffer_weights:
            # Constant index_map -> the weights never change across the grid,
            # so single-buffer them; the freed VMEM goes to a bigger row tile.
            def wspec(shape):
                return pl.BlockSpec(shape, lambda i: (0,) * len(shape),
                                    pipeline_mode=pl.Buffered(1))
        else:
            def wspec(shape):
                return pl.BlockSpec(shape, lambda i: (0,) * len(shape))

        return pl.pallas_call(
            kernel_fn,
            out_shape=jax.ShapeDtypeStruct((BH2, W2, two_c), x.dtype),
            grid=(pl.cdiv(BH2, t),),
            in_specs=[
                # One contiguous block carrying both row parities.
                pl.BlockSpec((t, 2, W2, two_c), lambda i: (i, 0, 0, 0)),
                wspec((two_c, two_c)),
                wspec((two_c, two_c)),
                wspec((1, two_c)),
            ],
            out_specs=pl.BlockSpec((t, W2, two_c), lambda i: (i, 0, 0)),
            compiler_params=pltpu.CompilerParams(
                dimension_semantics=("parallel",),
                vmem_limit_bytes=int(vmem_limit_bytes),
            ),
        )(xr, wt, wb, bias)

    try:
        out = _run(single_buffer_weights=True)
    except Exception:
        # Portability fallback: some toolchains may reject pl.Buffered(1).
        out = _run(single_buffer_weights=False)

    return out.reshape(B, H2 * W2, two_c)


def _reference(x, input_resolution, gamma, beta, w_red, eps=1e-5):
    H, W = input_resolution
    B, L, C = x.shape
    xg = x.reshape(B, H, W, C)
    x0 = xg[:, 0::2, 0::2, :]
    x1 = xg[:, 1::2, 0::2, :]
    x2 = xg[:, 0::2, 1::2, :]
    x3 = xg[:, 1::2, 1::2, :]
    xc = jnp.concatenate([x0, x1, x2, x3], axis=-1).reshape(B, -1, 4 * C)
    mean = jnp.mean(xc, axis=-1, keepdims=True)
    var = jnp.mean((xc - mean) ** 2, axis=-1, keepdims=True)
    xn = (xc - mean) / jnp.sqrt(var + eps) * gamma + beta
    return jnp.einsum("blk,kd->bld", xn, w_red)


if __name__ == "__main__":
    # Small shapes consistent with the module: B=2, C=4, H=W=16 -> x: (2, 256, 4)
    B, C, H, W = 2, 4, 16, 16
    key = jax.random.PRNGKey(0)
    kx, kw, kg, kb = jax.random.split(key, 4)

    x = jax.random.normal(kx, (B, H * W, C), dtype=jnp.float32)

    # Deterministic synthetic parameters (not a checkpoint):
    #   reduction: nn.Linear(4*dim, 2*dim, bias=False) applied as x @ W, W:(4C, 2C)
    #   norm: nn.LayerNorm(4*dim) -> gamma:(4C,), beta:(4C,)
    w_red = jax.random.normal(kw, (4 * C, 2 * C), dtype=jnp.float32) * 0.05
    gamma = 1.0 + 0.1 * jax.random.normal(kg, (4 * C,), dtype=jnp.float32)
    beta = 0.1 * jax.random.normal(kb, (4 * C,), dtype=jnp.float32)

    out = patch_merging(x, (H, W), gamma, beta, w_red)
    out = jax.block_until_ready(out)

    ref = _reference(x, (H, W), gamma, beta, w_red)
    assert out.shape == (B, (H // 2) * (W // 2), 2 * C), out.shape
    assert jnp.allclose(out, ref, atol=1e-4, rtol=1e-4), "mismatch vs reference"

    print("KERNEL_OK")
</pallas_src>

<mosaic_0001>
module attributes {stable_mosaic.version = 11 : i64} {
  func.func @_patch_merging_kernel(%arg0: i32, %arg1: memref<8x2x8x8xf32, #tpu.memory_space<vmem>>, %arg2: memref<8x8xf32, #tpu.memory_space<vmem>>, %arg3: memref<8x8xf32, #tpu.memory_space<vmem>>, %arg4: memref<1x8xf32, #tpu.memory_space<vmem>>, %arg5: memref<8x8x8xf32, #tpu.memory_space<vmem>>) attributes {dimension_semantics = [#tpu.dimension_semantics<parallel>], iteration_bounds = array<i64: 2>, scalar_prefetch = 0 : i64, scratch_operands = 0 : i64, tpu.core_type = #tpu.core_type<tc>, window_params = [{transform_indices = @transform_0, window_bounds = array<i64: 8, 2, 8, 8>}, {pipeline_mode = #tpu.pipeline_mode<synchronous>, transform_indices = @transform_1, window_bounds = array<i64: 8, 8>}, {pipeline_mode = #tpu.pipeline_mode<synchronous>, transform_indices = @transform_2, window_bounds = array<i64: 8, 8>}, {pipeline_mode = #tpu.pipeline_mode<synchronous>, transform_indices = @transform_3, window_bounds = array<i64: 1, 8>}, {transform_indices = @transform_4, window_bounds = array<i64: 8, 8, 8>}]} {
    %c0 = arith.constant 0 : index
    %c0_0 = arith.constant 0 : index
    %c0_1 = arith.constant 0 : index
    %c0_2 = arith.constant 0 : index
    %0 = vector.load %arg1[%c0, %c0_0, %c0_1, %c0_2] : memref<8x2x8x8xf32, #tpu.memory_space<vmem>>, vector<8x1x8x8xf32>
    %1 = vector.shape_cast %0 : vector<8x1x8x8xf32> to vector<8x8x8xf32>
    %c0_3 = arith.constant 0 : index
    %c1 = arith.constant 1 : index
    %c0_4 = arith.constant 0 : index
    %c0_5 = arith.constant 0 : index
    %2 = vector.load %arg1[%c0_3, %c1, %c0_4, %c0_5] : memref<8x2x8x8xf32, #tpu.memory_space<vmem>>, vector<8x1x8x8xf32>
    %3 = vector.shape_cast %2 : vector<8x1x8x8xf32> to vector<8x8x8xf32>
    %cst = arith.constant dense<0.000000e+00> : vector<8x8xf32>
    %4 = vector.multi_reduction <add>, %1, %cst [2] : vector<8x8x8xf32> to vector<8x8xf32>
    %5 = vector.shape_cast %4 : vector<8x8xf32> to vector<8x8x1xf32>
    %cst_6 = arith.constant dense<0.000000e+00> : vector<8x8xf32>
    %6 = vector.multi_reduction <add>, %3, %cst_6 [2] : vector<8x8x8xf32> to vector<8x8xf32>
    %7 = vector.shape_cast %6 : vector<8x8xf32> to vector<8x8x1xf32>
    %8 = arith.addf %5, %7 : vector<8x8x1xf32>
    %9 = arith.mulf %1, %1 : vector<8x8x8xf32>
    %cst_7 = arith.constant dense<0.000000e+00> : vector<8x8xf32>
    %10 = vector.multi_reduction <add>, %9, %cst_7 [2] : vector<8x8x8xf32> to vector<8x8xf32>
    %11 = vector.shape_cast %10 : vector<8x8xf32> to vector<8x8x1xf32>
    %12 = arith.mulf %3, %3 : vector<8x8x8xf32>
    %cst_8 = arith.constant dense<0.000000e+00> : vector<8x8xf32>
    %13 = vector.multi_reduction <add>, %12, %cst_8 [2] : vector<8x8x8xf32> to vector<8x8xf32>
    %14 = vector.shape_cast %13 : vector<8x8xf32> to vector<8x8x1xf32>
    %15 = arith.addf %11, %14 : vector<8x8x1xf32>
    %cst_9 = arith.constant 6.250000e-02 : f32
    %16 = vector.broadcast %cst_9 : f32 to vector<8x8x1xf32>
    %17 = arith.mulf %8, %16 : vector<8x8x1xf32>
    %cst_10 = arith.constant 6.250000e-02 : f32
    %18 = vector.broadcast %cst_10 : f32 to vector<8x8x1xf32>
    %19 = arith.mulf %15, %18 : vector<8x8x1xf32>
    %20 = arith.mulf %17, %17 : vector<8x8x1xf32>
    %21 = arith.subf %19, %20 : vector<8x8x1xf32>
    %cst_11 = arith.constant 0.000000e+00 : f32
    %22 = vector.broadcast %cst_11 : f32 to vector<8x8x1xf32>
    %23 = arith.maximumf %21, %22 : vector<8x8x1xf32>
    %cst_12 = arith.constant 9.99999974E-6 : f32
    %24 = vector.broadcast %cst_12 : f32 to vector<8x8x1xf32>
    %25 = arith.addf %23, %24 : vector<8x8x1xf32>
    %26 = math.rsqrt %25 : vector<8x8x1xf32>
    %27 = vector.broadcast %17 : vector<8x8x1xf32> to vector<8x8x8xf32>
    %28 = arith.subf %1, %27 : vector<8x8x8xf32>
    %29 = vector.broadcast %17 : vector<8x8x1xf32> to vector<8x8x8xf32>
    %30 = arith.subf %3, %29 : vector<8x8x8xf32>
    %31 = vector.shape_cast %28 : vector<8x8x8xf32> to vector<64x8xf32>
    %c0_13 = arith.constant 0 : index
    %c0_14 = arith.constant 0 : index
    %32 = vector.load %arg2[%c0_13, %c0_14] : memref<8x8xf32, #tpu.memory_space<vmem>>, vector<8x8xf32>
    %cst_15 = arith.constant dense<0.000000e+00> : vector<64x8xf32>
    %33 = tpu.matmul %31, %32, %cst_15 {dimension_numbers = #tpu.dot_dimension_numbers<[1], [0], [0], [1], [0, 0, 1, 1], [], []>} : vector<64x8xf32>, vector<8x8xf32>, vector<64x8xf32> -> vector<64x8xf32>
    %34 = vector.shape_cast %30 : vector<8x8x8xf32> to vector<64x8xf32>
    %c0_16 = arith.constant 0 : index
    %c0_17 = arith.constant 0 : index
    %35 = vector.load %arg3[%c0_16, %c0_17] : memref<8x8xf32, #tpu.memory_space<vmem>>, vector<8x8xf32>
    %cst_18 = arith.constant dense<0.000000e+00> : vector<64x8xf32>
    %36 = tpu.matmul %34, %35, %cst_18 {dimension_numbers = #tpu.dot_dimension_numbers<[1], [0], [0], [1], [0, 0, 1, 1], [], []>} : vector<64x8xf32>, vector<8x8xf32>, vector<64x8xf32> -> vector<64x8xf32>
    %37 = arith.addf %33, %36 : vector<64x8xf32>
    %38 = vector.shape_cast %37 : vector<64x8xf32> to vector<8x8x8xf32>
    %39 = vector.broadcast %26 : vector<8x8x1xf32> to vector<8x8x8xf32>
    %40 = arith.mulf %39, %38 : vector<8x8x8xf32>
    %c0_19 = arith.constant 0 : index
    %c0_20 = arith.constant 0 : index
    %41 = vector.load %arg4[%c0_19, %c0_20] : memref<1x8xf32, #tpu.memory_space<vmem>>, vector<1x8xf32>
    %42 = vector.shape_cast %41 : vector<1x8xf32> to vector<1x1x8xf32>
    %43 = vector.broadcast %42 : vector<1x1x8xf32> to vector<8x8x8xf32>
    %44 = arith.addf %40, %43 : vector<8x8x8xf32>
    %c0_21 = arith.constant 0 : index
    %c0_22 = arith.constant 0 : index
    %c0_23 = arith.constant 0 : index
    %45 = vector.load %arg5[%c0_21, %c0_22, %c0_23] : memref<8x8x8xf32, #tpu.memory_space<vmem>>, vector<8x8x8xf32>
    tpu.vector_store %arg5[%c0_21, %c0_22, %c0_23], %44 {strides = array<i32>} : memref<8x8x8xf32, #tpu.memory_space<vmem>>, vector<8x8x8xf32>,
    return
  }
  func.func @transform_0(%arg0: i32) -> (i32, i32, i32, i32) {
    %c0_i32 = arith.constant 0 : i32
    %c0_i32_0 = arith.constant 0 : i32
    %c0_i32_1 = arith.constant 0 : i32
    %c0_i32_2 = arith.constant 0 : i32
    return %arg0, %c0_i32, %c0_i32_0, %c0_i32_1 : i32, i32, i32, i32
  }
  func.func @transform_1(%arg0: i32) -> (i32, i32) {
    %c0_i32 = arith.constant 0 : i32
    %c0_i32_0 = arith.constant 0 : i32
    %c0_i32_1 = arith.constant 0 : i32
    return %c0_i32, %c0_i32_0 : i32, i32
  }
  func.func @transform_2(%arg0: i32) -> (i32, i32) {
    %c0_i32 = arith.constant 0 : i32
    %c0_i32_0 = arith.constant 0 : i32
    %c0_i32_1 = arith.constant 0 : i32
    return %c0_i32, %c0_i32_0 : i32, i32
  }
  func.func @transform_3(%arg0: i32) -> (i32, i32) {
    %c0_i32 = arith.constant 0 : i32
    %c0_i32_0 = arith.constant 0 : i32
    %c0_i32_1 = arith.constant 0 : i32
    return %c0_i32, %c0_i32_0 : i32, i32
  }
  func.func @transform_4(%arg0: i32) -> (i32, i32, i32) {
    %c0_i32 = arith.constant 0 : i32
    %c0_i32_0 = arith.constant 0 : i32
    %c0_i32_1 = arith.constant 0 : i32
    return %arg0, %c0_i32, %c0_i32_0 : i32, i32, i32
  }
}

module attributes {stable_mosaic.version = 11 : i64} {
  func.func @_patch_merging_kernel(%arg0: i32, %arg1: memref<8x2x8x8xf32, #tpu.memory_space<vmem>>, %arg2: memref<8x8xf32, #tpu.memory_space<vmem>>, %arg3: memref<8x8xf32, #tpu.memory_space<vmem>>, %arg4: memref<1x8xf32, #tpu.memory_space<vmem>>, %arg5: memref<8x8x8xf32, #tpu.memory_space<vmem>>) attributes {dimension_semantics = [#tpu.dimension_semantics<parallel>], iteration_bounds = array<i64: 2>, scalar_prefetch = 0 : i64, scratch_operands = 0 : i64, tpu.core_type = #tpu.core_type<tc>, window_params = [{transform_indices = @transform_0, window_bounds = array<i64: 8, 2, 8, 8>}, {pipeline_mode = #tpu.pipeline_mode<synchronous>, transform_indices = @transform_1, window_bounds = array<i64: 8, 8>}, {pipeline_mode = #tpu.pipeline_mode<synchronous>, transform_indices = @transform_2, window_bounds = array<i64: 8, 8>}, {pipeline_mode = #tpu.pipeline_mode<synchronous>, transform_indices = @transform_3, window_bounds = array<i64: 1, 8>}, {transform_indices = @transform_4, window_bounds = array<i64: 8, 8, 8>}]} {
    %c0 = arith.constant 0 : index
    %c0_0 = arith.constant 0 : index
    %c0_1 = arith.constant 0 : index
    %c0_2 = arith.constant 0 : index
    %0 = vector.load %arg1[%c0, %c0_0, %c0_1, %c0_2] : memref<8x2x8x8xf32, #tpu.memory_space<vmem>>, vector<8x1x8x8xf32>
    %1 = vector.shape_cast %0 : vector<8x1x8x8xf32> to vector<8x8x8xf32>
    %c0_3 = arith.constant 0 : index
    %c1 = arith.constant 1 : index
    %c0_4 = arith.constant 0 : index
    %c0_5 = arith.constant 0 : index
    %2 = vector.load %arg1[%c0_3, %c1, %c0_4, %c0_5] : memref<8x2x8x8xf32, #tpu.memory_space<vmem>>, vector<8x1x8x8xf32>
    %3 = vector.shape_cast %2 : vector<8x1x8x8xf32> to vector<8x8x8xf32>
    %cst = arith.constant dense<0.000000e+00> : vector<8x8xf32>
    %4 = vector.multi_reduction <add>, %1, %cst [2] : vector<8x8x8xf32> to vector<8x8xf32>
    %5 = vector.shape_cast %4 : vector<8x8xf32> to vector<8x8x1xf32>
    %cst_6 = arith.constant dense<0.000000e+00> : vector<8x8xf32>
    %6 = vector.multi_reduction <add>, %3, %cst_6 [2] : vector<8x8x8xf32> to vector<8x8xf32>
    %7 = vector.shape_cast %6 : vector<8x8xf32> to vector<8x8x1xf32>
    %8 = arith.addf %5, %7 : vector<8x8x1xf32>
    %9 = arith.mulf %1, %1 : vector<8x8x8xf32>
    %cst_7 = arith.constant dense<0.000000e+00> : vector<8x8xf32>
    %10 = vector.multi_reduction <add>, %9, %cst_7 [2] : vector<8x8x8xf32> to vector<8x8xf32>
    %11 = vector.shape_cast %10 : vector<8x8xf32> to vector<8x8x1xf32>
    %12 = arith.mulf %3, %3 : vector<8x8x8xf32>
    %cst_8 = arith.constant dense<0.000000e+00> : vector<8x8xf32>
    %13 = vector.multi_reduction <add>, %12, %cst_8 [2] : vector<8x8x8xf32> to vector<8x8xf32>
    %14 = vector.shape_cast %13 : vector<8x8xf32> to vector<8x8x1xf32>
    %15 = arith.addf %11, %14 : vector<8x8x1xf32>
    %cst_9 = arith.constant 6.250000e-02 : f32
    %16 = vector.broadcast %cst_9 : f32 to vector<8x8x1xf32>
    %17 = arith.mulf %8, %16 : vector<8x8x1xf32>
    %cst_10 = arith.constant 6.250000e-02 : f32
    %18 = vector.broadcast %cst_10 : f32 to vector<8x8x1xf32>
    %19 = arith.mulf %15, %18 : vector<8x8x1xf32>
    %20 = arith.mulf %17, %17 : vector<8x8x1xf32>
    %21 = arith.subf %19, %20 : vector<8x8x1xf32>
    %cst_11 = arith.constant 0.000000e+00 : f32
    %22 = vector.broadcast %cst_11 : f32 to vector<8x8x1xf32>
    %23 = arith.maximumf %21, %22 : vector<8x8x1xf32>
    %cst_12 = arith.constant 9.99999974E-6 : f32
    %24 = vector.broadcast %cst_12 : f32 to vector<8x8x1xf32>
    %25 = arith.addf %23, %24 : vector<8x8x1xf32>
    %26 = math.rsqrt %25 : vector<8x8x1xf32>
    %27 = vector.broadcast %17 : vector<8x8x1xf32> to vector<8x8x8xf32>
    %28 = arith.subf %1, %27 : vector<8x8x8xf32>
    %29 = vector.broadcast %17 : vector<8x8x1xf32> to vector<8x8x8xf32>
    %30 = arith.subf %3, %29 : vector<8x8x8xf32>
    %31 = vector.shape_cast %28 : vector<8x8x8xf32> to vector<64x8xf32>
    %c0_13 = arith.constant 0 : index
    %c0_14 = arith.constant 0 : index
    %32 = vector.load %arg2[%c0_13, %c0_14] : memref<8x8xf32, #tpu.memory_space<vmem>>, vector<8x8xf32>
    %cst_15 = arith.constant dense<0.000000e+00> : vector<64x8xf32>
    %33 = tpu.matmul %31, %32, %cst_15 {dimension_numbers = #tpu.dot_dimension_numbers<[1], [0], [0], [1], [0, 0, 1, 1], [], []>} : vector<64x8xf32>, vector<8x8xf32>, vector<64x8xf32> -> vector<64x8xf32>
    %34 = vector.shape_cast %30 : vector<8x8x8xf32> to vector<64x8xf32>
    %c0_16 = arith.constant 0 : index
    %c0_17 = arith.constant 0 : index
    %35 = vector.load %arg3[%c0_16, %c0_17] : memref<8x8xf32, #tpu.memory_space<vmem>>, vector<8x8xf32>
    %cst_18 = arith.constant dense<0.000000e+00> : vector<64x8xf32>
    %36 = tpu.matmul %34, %35, %cst_18 {dimension_numbers = #tpu.dot_dimension_numbers<[1], [0], [0], [1], [0, 0, 1, 1], [], []>} : vector<64x8xf32>, vector<8x8xf32>, vector<64x8xf32> -> vector<64x8xf32>
    %37 = arith.addf %33, %36 : vector<64x8xf32>
    %38 = vector.shape_cast %37 : vector<64x8xf32> to vector<8x8x8xf32>
    %39 = vector.broadcast %26 : vector<8x8x1xf32> to vector<8x8x8xf32>
    %40 = arith.mulf %39, %38 : vector<8x8x8xf32>
    %c0_19 = arith.constant 0 : index
    %c0_20 = arith.constant 0 : index
    %41 = vector.load %arg4[%c0_19, %c0_20] : memref<1x8xf32, #tpu.memory_space<vmem>>, vector<1x8xf32>
    %42 = vector.shape_cast %41 : vector<1x8xf32> to vector<1x1x8xf32>
    %43 = vector.broadcast %42 : vector<1x1x8xf32> to vector<8x8x8xf32>
    %44 = arith.addf %40, %43 : vector<8x8x8xf32>
    %c0_21 = arith.constant 0 : index
    %c0_22 = arith.constant 0 : index
    %c0_23 = arith.constant 0 : index
    %45 = vector.load %arg5[%c0_21, %c0_22, %c0_23] : memref<8x8x8xf32, #tpu.memory_space<vmem>>, vector<8x8x8xf32>
    tpu.vector_store %arg5[%c0_21, %c0_22, %c0_23], %44 {strides = array<i32>} : memref<8x8x8xf32, #tpu.memory_space<vmem>>, vector<8x8x8xf32>,
    return
  }
  func.func @transform_0(%arg0: i32) -> (i32, i32, i32, i32) {
    %c0_i32 = arith.constant 0 : i32
    %c0_i32_0 = arith.constant 0 : i32
    %c0_i32_1 = arith.constant 0 : i32
    %c0_i32_2 = arith.constant 0 : i32
    return %arg0, %c0_i32, %c0_i32_0, %c0_i32_1 : i32, i32, i32, i32
  }
  func.func @transform_1(%arg0: i32) -> (i32, i32) {
    %c0_i32 = arith.constant 0 : i32
    %c0_i32_0 = arith.constant 0 : i32
    %c0_i32_1 = arith.constant 0 : i32
    return %c0_i32, %c0_i32_0 : i32, i32
  }
  func.func @transform_2(%arg0: i32) -> (i32, i32) {
    %c0_i32 = arith.constant 0 : i32
    %c0_i32_0 = arith.constant 0 : i32
    %c0_i32_1 = arith.constant 0 : i32
    return %c0_i32, %c0_i32_0 : i32, i32
  }
  func.func @transform_3(%arg0: i32) -> (i32, i32) {
    %c0_i32 = arith.constant 0 : i32
    %c0_i32_0 = arith.constant 0 : i32
    %c0_i32_1 = arith.constant 0 : i32
    return %c0_i32, %c0_i32_0 : i32, i32
  }
  func.func @transform_4(%arg0: i32) -> (i32, i32, i32) {
    %c0_i32 = arith.constant 0 : i32
    %c0_i32_0 = arith.constant 0 : i32
    %c0_i32_1 = arith.constant 0 : i32
    return %arg0, %c0_i32, %c0_i32_0 : i32, i32, i32
  }
}

</mosaic_0001>

<llo_original>
// kernel: tpu_custom_call.1
$region0: #{tpu_custom_call.1}
  #allocation0 [shape = 'u32[]', space=smem, size = 0x4, offset = 0x4, fixed_abs, tag = 'smem constant byte address 0x4 - core index']
  #allocation1 [shape = 'u32[72,128]{1,0:T(1,128)}', space=vmem, size = 0x9000, scoped, tag = 'internal scratch']
  %s0 = inlined_call_operand.vmem [shape: f32[16,2,8,8], index: 0, kind: input, shape index: {}]
  %s1 = inlined_call_operand.vmem [shape: f32[8,8], index: 1, kind: input, shape index: {}]
  %s2 = inlined_call_operand.vmem [shape: f32[8,8], index: 2, kind: input, shape index: {}]
  %s3 = inlined_call_operand.vmem [shape: f32[1,8], index: 3, kind: input, shape index: {}]
  %s4 = inlined_call_operand.vmem [shape: f32[16,8,8], index: 4, kind: output, shape index: {}]
  %s5 = sld [smem:[#allocation0]]
  $region49: #{tpu_custom_call.1} parent=0
    _
  %s7 = ssub.s32 1, %s5
  %s8 = scalar_select 0, %s7, %s5
  loop: start=0, step=1, limit=4
  $region2: #{tpu_custom_call.1} parent=0 // loop_pre_header
    _
  $region3: #{tpu_custom_call.1} parent=0 // loop_header
    %s10 = sphi 0, %s14
    %p11 = scmp.ge.s32.totalorder %s10, 4
    %s20 = sphi 0, %s22
    %s23 = sphi 0, %s20
    %s24 = sphi 0, %s23
    %s40 = sphi 0, %s24
    %s44 = sphi 0, %s44
    %s46 = sphi 0, %s44
    %s47 = sphi 0, %s46
    %s61 = sphi 0, %s47
    %s65 = sphi 0, %s65
    %s67 = sphi 0, %s65
    %s68 = sphi 0, %s67
    %s82 = sphi 0, %s68
    %s86 = sphi 0, %s86
    %s88 = sphi 0, %s86
    %s89 = sphi 0, %s88
    %s103 = sphi 0, %s89
    %s109 = sphi 0, %s111
    %s112 = sphi 0, %s109
    %s113 = sphi 0, %s112
    %s129 = sphi 0, %s113
  $region4: #{tpu_custom_call.1} parent=0 // loop_header_branch
    %13 = sbr.rel (%p11) target = $region8
  $region5: #{tpu_custom_call.1} parent=0 // loop_body
    %s15 = ssub.s32 %s10, 1
    %s16 = ssub.s32 %s10, 2
    %s17 = sadd.s32 %s10, 1
    %s18 = ssub.s32 %s10, %s17
    %p19 = scmp.eq.s32.totalorder %s18, 0
    %s21 = sadd.s32 %s20, 1
    %s22 = scalar_select %p19, %s20, %s21
    %p25 = pneg %p19
    %p26 = scmp.eq.s32.totalorder %s10, 1
    %p27 = por %p25, %p26
    %p28 = scmp.ne.s32.totalorder %s20, %s23
    %p29 = scmp.eq.s32.totalorder %s10, 0
    %p30 = por %p28, %p29
    %p31 = scmp.ne.s32.totalorder %s20, %s23
    %p32 = scmp.eq.s32.totalorder %s15, 1
    %p33 = por %p31, %p32
    %p34 = scmp.ne.s32.totalorder %s23, %s24
    %p35 = scmp.eq.s32.totalorder %s15, 0
    %p36 = por %p34, %p35
    %p37 = scmp.ne.s32.totalorder %s23, %s24
    %p38 = scmp.eq.s32.totalorder %s16, 1
    %p39 = por %p37, %p38
    %p41 = scmp.ne.s32.totalorder %s24, %s40
    %p42 = scmp.eq.s32.totalorder %s16, 0
    %p43 = por %p41, %p42
    %s45 = sadd.s32 %s44, 1
    %p48 = scmp.eq.s32.totalorder %s10, 1
    %p49 = scmp.ne.s32.totalorder %s44, %s46
    %p50 = scmp.eq.s32.totalorder %s10, 0
    %p51 = por %p49, %p50
    %p52 = scmp.ne.s32.totalorder %s44, %s46
    %p53 = scmp.eq.s32.totalorder %s15, 1
    %p54 = por %p52, %p53
    %p55 = scmp.ne.s32.totalorder %s46, %s47
    %p56 = scmp.eq.s32.totalorder %s15, 0
    %p57 = por %p55, %p56
    %p58 = scmp.ne.s32.totalorder %s46, %s47
    %p59 = scmp.eq.s32.totalorder %s16, 1
    %p60 = por %p58, %p59
    %p62 = scmp.ne.s32.totalorder %s47, %s61
    %p63 = scmp.eq.s32.totalorder %s16, 0
    %p64 = por %p62, %p63
    %s66 = sadd.s32 %s65, 1
    %p69 = scmp.eq.s32.totalorder %s10, 1
    %p70 = scmp.ne.s32.totalorder %s65, %s67
    %p71 = scmp.eq.s32.totalorder %s10, 0
    %p72 = por %p70, %p71
    %p73 = scmp.ne.s32.totalorder %s65, %s67
    %p74 = scmp.eq.s32.totalorder %s15, 1
    %p75 = por %p73, %p74
    %p76 = scmp.ne.s32.totalorder %s67, %s68
    %p77 = scmp.eq.s32.totalorder %s15, 0
    %p78 = por %p76, %p77
    %p79 = scmp.ne.s32.totalorder %s67, %s68
    %p80 = scmp.eq.s32.totalorder %s16, 1
    %p81 = por %p79, %p80
    %p83 = scmp.ne.s32.totalorder %s68, %s82
    %p84 = scmp.eq.s32.totalorder %s16, 0
    %p85 = por %p83, %p84
    %s87 = sadd.s32 %s86, 1
    %p90 = scmp.eq.s32.totalorder %s10, 1
    %p91 = scmp.ne.s32.totalorder %s86, %s88
    %p92 = scmp.eq.s32.totalorder %s10, 0
    %p93 = por %p91, %p92
    %p94 = scmp.ne.s32.totalorder %s86, %s88
    %p95 = scmp.eq.s32.totalorder %s15, 1
    %p96 = por %p94, %p95
    %p97 = scmp.ne.s32.totalorder %s88, %s89
    %p98 = scmp.eq.s32.totalorder %s15, 0
    %p99 = por %p97, %p98
    %p100 = scmp.ne.s32.totalorder %s88, %s89
    %p101 = scmp.eq.s32.totalorder %s16, 1
    %p102 = por %p100, %p101
    %p104 = scmp.ne.s32.totalorder %s89, %s103
    %p105 = scmp.eq.s32.totalorder %s16, 0
    %p106 = por %p104, %p105
    %s107 = ssub.s32 %s10, %s17
    %p108 = scmp.eq.s32.totalorder %s107, 0
    %s110 = sadd.s32 %s109, 1
    %s111 = scalar_select %p108, %s109, %s110
    %p114 = pneg %p108
    %p115 = scmp.eq.s32.totalorder %s10, 1
    %p116 = por %p114, %p115
    %p117 = scmp.ne.s32.totalorder %s109, %s112
    %p118 = scmp.eq.s32.totalorder %s10, 0
    %p119 = por %p117, %p118
    %p120 = scmp.ne.s32.totalorder %s109, %s112
    %p121 = scmp.eq.s32.totalorder %s15, 1
    %p122 = por %p120, %p121
    %p123 = scmp.ne.s32.totalorder %s112, %s113
    %p124 = scmp.eq.s32.totalorder %s15, 0
    %p125 = por %p123, %p124
    %p126 = scmp.ne.s32.totalorder %s112, %s113
    %p127 = scmp.eq.s32.totalorder %s16, 1
    %p128 = por %p126, %p127
    %p130 = scmp.ne.s32.totalorder %s113, %s129
    %p131 = scmp.eq.s32.totalorder %s16, 0
    %p132 = por %p130, %p131
    %p133 = scmp.le.s32.totalorder 1, %s10
    %p134 = scmp.lt.s32.totalorder %s10, 3
    %p135 = pnand %p133, %p134
    %p136 = pneg %p135
    // Predicated region
    $region9: #{tpu_custom_call.1} parent=5 // pred_check
      _
    $region10: #{tpu_custom_call.1} parent=5 // pred_check_branch
      %138 = sbr.rel (%p135) target = $region12
    $region11: #{tpu_custom_call.1} parent=5 // pred_region
      %s139 = ssub.s32 %s10, 1
      // Predicated region
      $region13: #{tpu_custom_call.1} parent=11 // pred_check
        %p140 = pneg %p57
      $region14: #{tpu_custom_call.1} parent=11 // pred_check_branch
        %142 = sbr.rel (%p140) target = $region16
      $region15: #{tpu_custom_call.1} parent=11 // pred_region
        _
      $region16: #{tpu_custom_call.1} parent=11 // pred_fallthru
        _
      // Predicated region
      $region17: #{tpu_custom_call.1} parent=11 // pred_check
        %p143 = pneg %p78
      $region18: #{tpu_custom_call.1} parent=11 // pred_check_branch
        %145 = sbr.rel (%p143) target = $region20
      $region19: #{tpu_custom_call.1} parent=11 // pred_region
        _
      $region20: #{tpu_custom_call.1} parent=11 // pred_fallthru
        _
      // Predicated region
      $region21: #{tpu_custom_call.1} parent=11 // pred_check
        %p146 = pneg %p99
      $region22: #{tpu_custom_call.1} parent=11 // pred_check_branch
        %148 = sbr.rel (%p146) target = $region24
      $region23: #{tpu_custom_call.1} parent=11 // pred_region
        _
      $region24: #{tpu_custom_call.1} parent=11 // pred_fallthru
        _
    $region12: #{tpu_custom_call.1} parent=5 // pred_fallthru
      _
    %p149 = scmp.lt.s32.totalorder %s10, 2
    // Predicated region
    $region25: #{tpu_custom_call.1} parent=5 // pred_check
      %p150 = pneg %p149
    $region26: #{tpu_custom_call.1} parent=5 // pred_check_branch
      %152 = sbr.rel (%p150) target = $region28
    $region27: #{tpu_custom_call.1} parent=5 // pred_region
      // Predicated region
      $region29: #{tpu_custom_call.1} parent=27 // pred_check
        %p153 = pneg %p30
      $region30: #{tpu_custom_call.1} parent=27 // pred_check_branch
        %155 = sbr.rel (%p153) target = $region32
      $region31: #{tpu_custom_call.1} parent=27 // pred_region
        %s156 = smul.u32 8, %s10
        %p157 = scmp.lt.s32.totalorder %s156, 15
        %s158 = scalar_select %p157, %s156, 15
        %s159 = smul.addr %s158, 2
        %s160 = smul.addr %s159, 8
        %s161 = scalar_lea.vmem %s0, %s160
        %s162 = smul.u32 8, %s10
      $region32: #{tpu_custom_call.1} parent=27 // pred_fallthru
        _
    $region28: #{tpu_custom_call.1} parent=5 // pred_fallthru
      _
    %p163 = scmp.le.s32.totalorder 1, %s10
    %p164 = scmp.lt.s32.totalorder %s10, 3
    %p165 = pnand %p163, %p164
    %p166 = pneg %p165
    // Predicated region
    $region33: #{tpu_custom_call.1} parent=5 // pred_check
      _
    $region34: #{tpu_custom_call.1} parent=5 // pred_check_branch
      %168 = sbr.rel (%p165) target = $region36
    $region35: #{tpu_custom_call.1} parent=5 // pred_region
      %s169 = ssub.s32 %s10, 1
      %s170 = smul.u32 8, %s15
      %p171 = scmp.lt.s32.totalorder %s170, 15
      %s172 = scalar_select %p171, %s170, 15
      %s173 = smul.addr %s172, 2
      %s174 = smul.addr %s173, 8
      %s175 = scalar_lea.vmem %s0, %s174
      %p176 = pneg %p36
      %p177 = pneg %p33
      %p178 = pneg %p57
      %p179 = pneg %p54
      %p180 = pneg %p78
      %p181 = pneg %p75
      %p182 = pneg %p99
      %p183 = pneg %p96
      %p184 = pneg %p125
      %p185 = pneg %p122
      %s186 = smul.u32 8, %s15
      %p187 = scmp.lt.s32.totalorder %s186, 15
      %s188 = scalar_select %p187, %s186, 15
      %s189 = smul.addr %s188, 8
      %s190 = scalar_lea.vmem %s4, %s189
      %s191 = smul.u32 8, %s15
      %p192 = scmp.lt.s32.totalorder %s191, 15
      %s193 = scalar_select %p192, %s191, 15
      %s194 = smul.addr %s193, 2
      %s195 = smul.addr %s194, 8
      %s196 = scalar_lea.vmem %s0, %s195
      %s197 = smul.u32 8, %s15
      %s198 = smul.u32 8, %s15
      %p199 = scmp.lt.s32.totalorder %s198, 15
      %s200 = scalar_select %p199, %s198, 15
      %s201 = smul.addr %s200, 8
      %s202 = scalar_lea.vmem %s4, %s201
      %s203 = smul.u32 8, %s15
      %v204 = vld [vmem:[%s196] sm:$0xff]
      %v205 = vld [vmem:[%s196 + $0x10] sm:$0xff]
      %v206 = vld [vmem:[%s196 + $0x20] sm:$0xff]
      %v207 = vld [vmem:[%s196 + $0x30] sm:$0xff]
      %v208 = vld [vmem:[%s196 + $0x40] sm:$0xff]
      %v209 = vld [vmem:[%s196 + $0x50] sm:$0xff]
      %v210 = vld [vmem:[%s196 + $0x60] sm:$0xff]
      %v211 = vld [vmem:[%s196 + $0x70] sm:$0xff]
      %s212 = scalar_lea.vmem %s196, 8
      %v213 = vld [vmem:[%s212] sm:$0xff]
      %v214 = vld [vmem:[%s212 + $0x10] sm:$0xff]
      %v215 = vld [vmem:[%s212 + $0x20] sm:$0xff]
      %v216 = vld [vmem:[%s212 + $0x30] sm:$0xff]
      %v217 = vld [vmem:[%s212 + $0x40] sm:$0xff]
      %v218 = vld [vmem:[%s212 + $0x50] sm:$0xff]
      %v219 = vld [vmem:[%s212 + $0x60] sm:$0xff]
      %v220 = vld [vmem:[%s212 + $0x70] sm:$0xff]
      %vm221 = vcmask 64512
      %v222 = vsel %vm221, %v204, 0.0
      %223 = vadd.xlane.f32.xlu0 %v222
      %v224 = vpop.xlane.xlu0 %223
      %v225 = vsel %vm221, %v205, 0.0
      %226 = vadd.xlane.f32.xlu0 %v225
      %v227 = vpop.xlane.xlu0 %226
      %v228 = vsel %vm221, %v206, 0.0
      %229 = vadd.xlane.f32.xlu0 %v228
      %v230 = vpop.xlane.xlu0 %229
      %v231 = vsel %vm221, %v207, 0.0
      %232 = vadd.xlane.f32.xlu0 %v231
      %v233 = vpop.xlane.xlu0 %232
      %v234 = vsel %vm221, %v208, 0.0
      %235 = vadd.xlane.f32.xlu0 %v234
      %v236 = vpop.xlane.xlu0 %235
      %v237 = vsel %vm221, %v209, 0.0
      %238 = vadd.xlane.f32.xlu0 %v237
      %v239 = vpop.xlane.xlu0 %238
      %v240 = vsel %vm221, %v210, 0.0
      %241 = vadd.xlane.f32.xlu0 %v240
      %v242 = vpop.xlane.xlu0 %241
      %v243 = vsel %vm221, %v211, 0.0
      %244 = vadd.xlane.f32.xlu0 %v243
      %v245 = vpop.xlane.xlu0 %244
      %v246 = vsel %vm221, %v213, 0.0
      %247 = vadd.xlane.f32.xlu0 %v246
      %v248 = vpop.xlane.xlu0 %247
      %v249 = vsel %vm221, %v214, 0.0
      %250 = vadd.xlane.f32.xlu0 %v249
      %v251 = vpop.xlane.xlu0 %250
      %v252 = vsel %vm221, %v215, 0.0
      %253 = vadd.xlane.f32.xlu0 %v252
      %v254 = vpop.xlane.xlu0 %253
      %v255 = vsel %vm221, %v216, 0.0
      %256 = vadd.xlane.f32.xlu0 %v255
      %v257 = vpop.xlane.xlu0 %256
      %v258 = vsel %vm221, %v217, 0.0
      %259 = vadd.xlane.f32.xlu0 %v258
      %v260 = vpop.xlane.xlu0 %259
      %v261 = vsel %vm221, %v218, 0.0
      %262 = vadd.xlane.f32.xlu0 %v261
      %v263 = vpop.xlane.xlu0 %262
      %v264 = vsel %vm221, %v219, 0.0
      %265 = vadd.xlane.f32.xlu0 %v264
      %v266 = vpop.xlane.xlu0 %265
      %v267 = vsel %vm221, %v220, 0.0
      %268 = vadd.xlane.f32.xlu0 %v267
      %v269 = vpop.xlane.xlu0 %268
      %v270 = vadd.f32 %v224, %v248
      %v271 = vadd.f32 %v227, %v251
      %v272 = vadd.f32 %v230, %v254
      %v273 = vadd.f32 %v233, %v257
      %v274 = vadd.f32 %v236, %v260
      %v275 = vadd.f32 %v239, %v263
      %v276 = vadd.f32 %v242, %v266
      %v277 = vadd.f32 %v245, %v269
      %v278 = vmul.f32 %v204, %v204
      %v279 = vmul.f32 %v205, %v205
      %v280 = vmul.f32 %v206, %v206
      %v281 = vmul.f32 %v207, %v207
      %v282 = vmul.f32 %v208, %v208
      %v283 = vmul.f32 %v209, %v209
      %v284 = vmul.f32 %v210, %v210
      %v285 = vmul.f32 %v211, %v211
      %v286 = vsel %vm221, %v278, 0.0
      %287 = vadd.xlane.f32.xlu0 %v286
      %v288 = vpop.xlane.xlu0 %287
      %v289 = vsel %vm221, %v279, 0.0
      %290 = vadd.xlane.f32.xlu0 %v289
      %v291 = vpop.xlane.xlu0 %290
      %v292 = vsel %vm221, %v280, 0.0
      %293 = vadd.xlane.f32.xlu0 %v292
      %v294 = vpop.xlane.xlu0 %293
      %v295 = vsel %vm221, %v281, 0.0
      %296 = vadd.xlane.f32.xlu0 %v295
      %v297 = vpop.xlane.xlu0 %296
      %v298 = vsel %vm221, %v282, 0.0
      %299 = vadd.xlane.f32.xlu0 %v298
      %v300 = vpop.xlane.xlu0 %299
      %v301 = vsel %vm221, %v283, 0.0
      %302 = vadd.xlane.f32.xlu0 %v301
      %v303 = vpop.xlane.xlu0 %302
      %v304 = vsel %vm221, %v284, 0.0
      %305 = vadd.xlane.f32.xlu0 %v304
      %v306 = vpop.xlane.xlu0 %305
      %v307 = vsel %vm221, %v285, 0.0
      %308 = vadd.xlane.f32.xlu0 %v307
      %v309 = vpop.xlane.xlu0 %308
      %v310 = vmul.f32 %v213, %v213
      %v311 = vmul.f32 %v214, %v214
      %v312 = vmul.f32 %v215, %v215
      %v313 = vmul.f32 %v216, %v216
      %v314 = vmul.f32 %v217, %v217
      %v315 = vmul.f32 %v218, %v218
      %v316 = vmul.f32 %v219, %v219
      %v317 = vmul.f32 %v220, %v220
      %v318 = vsel %vm221, %v310, 0.0
      %319 = vadd.xlane.f32.xlu0 %v318
      %v320 = vpop.xlane.xlu0 %319
      %v321 = vsel %vm221, %v311, 0.0
      %322 = vadd.xlane.f32.xlu0 %v321
      %v323 = vpop.xlane.xlu0 %322
      %v324 = vsel %vm221, %v312, 0.0
      %325 = vadd.xlane.f32.xlu0 %v324
      %v326 = vpop.xlane.xlu0 %325
      %v327 = vsel %vm221, %v313, 0.0
      %328 = vadd.xlane.f32.xlu0 %v327
      %v329 = vpop.xlane.xlu0 %328
      %v330 = vsel %vm221, %v314, 0.0
      %331 = vadd.xlane.f32.xlu0 %v330
      %v332 = vpop.xlane.xlu0 %331
      %v333 = vsel %vm221, %v315, 0.0
      %334 = vadd.xlane.f32.xlu0 %v333
      %v335 = vpop.xlane.xlu0 %334
      %v336 = vsel %vm221, %v316, 0.0
      %337 = vadd.xlane.f32.xlu0 %v336
      %v338 = vpop.xlane.xlu0 %337
      %v339 = vsel %vm221, %v317, 0.0
      %340 = vadd.xlane.f32.xlu0 %v339
      %v341 = vpop.xlane.xlu0 %340
      %v342 = vadd.f32 %v288, %v320
      %v343 = vadd.f32 %v291, %v323
      %v344 = vadd.f32 %v294, %v326
      %v345 = vadd.f32 %v297, %v329
      %v346 = vadd.f32 %v300, %v332
      %v347 = vadd.f32 %v303, %v335
      %v348 = vadd.f32 %v306, %v338
      %v349 = vadd.f32 %v309, %v341
      %v350 = vmul.f32 %v270, 0.0625
      %v351 = vmul.f32 %v271, 0.0625
      %v352 = vmul.f32 %v272, 0.0625
      %v353 = vmul.f32 %v273, 0.0625
      %v354 = vmul.f32 %v274, 0.0625
      %v355 = vmul.f32 %v275, 0.0625
      %v356 = vmul.f32 %v276, 0.0625
      %v357 = vmul.f32 %v277, 0.0625
      %v358 = vmul.f32 %v342, 0.0625
      %v359 = vmul.f32 %v343, 0.0625
      %v360 = vmul.f32 %v344, 0.0625
      %v361 = vmul.f32 %v345, 0.0625
      %v362 = vmul.f32 %v346, 0.0625
      %v363 = vmul.f32 %v347, 0.0625
      %v364 = vmul.f32 %v348, 0.0625
      %v365 = vmul.f32 %v349, 0.0625
      %v366 = vmul.f32 %v350, %v350
      %v367 = vmul.f32 %v351, %v351
      %v368 = vmul.f32 %v352, %v352
      %v369 = vmul.f32 %v353, %v353
      %v370 = vmul.f32 %v354, %v354
      %v371 = vmul.f32 %v355, %v355
      %v372 = vmul.f32 %v356, %v356
      %v373 = vmul.f32 %v357, %v357
      %v374 = vsub.f32 %v358, %v366
      %v375 = vsub.f32 %v359, %v367
      %v376 = vsub.f32 %v360, %v368
      %v377 = vsub.f32 %v361, %v369
      %v378 = vsub.f32 %v362, %v370
      %v379 = vsub.f32 %v363, %v371
      %v380 = vsub.f32 %v364, %v372
      %v381 = vsub.f32 %v365, %v373
      %v382 = vmax.f32 %v374, 0.0
      %v383 = vmax.f32 %v375, 0.0
      %v384 = vmax.f32 %v376, 0.0
      %v385 = vmax.f32 %v377, 0.0
      %v386 = vmax.f32 %v378, 0.0
      %v387 = vmax.f32 %v379, 0.0
      %v388 = vmax.f32 %v380, 0.0
      %v389 = vmax.f32 %v381, 0.0
      %v390 = vadd.f32 %v382, 1e-05
      %v391 = vadd.f32 %v383, 1e-05
      %v392 = vadd.f32 %v384, 1e-05
      %v393 = vadd.f32 %v385, 1e-05
      %v394 = vadd.f32 %v386, 1e-05
      %v395 = vadd.f32 %v387, 1e-05
      %v396 = vadd.f32 %v388, 1e-05
      %v397 = vadd.f32 %v389, 1e-05
      %v398 = vrsqrt.pop %v390
      %v399 = vmul.f32 %v398, %v390
      %v400 = vmul.f32 %v399, %v398
      %v401 = vmul.f32 0.5, %v400
      %v402 = vsub.f32 1.5, %v401
      %v403 = vmul.f32 %v398, %v402
      %vm404 = vweird.f32 %v390
      %vm405 = vweird.f32 %v398
      %vm406 = vmor %vm404, %vm405
      %v407 = vsel %vm406, %v398, %v403
      %v408 = vrsqrt.pop %v391
      %v409 = vmul.f32 %v408, %v391
      %v410 = vmul.f32 %v409, %v408
      %v411 = vmul.f32 0.5, %v410
      %v412 = vsub.f32 1.5, %v411
      %v413 = vmul.f32 %v408, %v412
      %vm414 = vweird.f32 %v391
      %vm415 = vweird.f32 %v408
      %vm416 = vmor %vm414, %vm415
      %v417 = vsel %vm416, %v408, %v413
      %v418 = vrsqrt.pop %v392
      %v419 = vmul.f32 %v418, %v392
      %v420 = vmul.f32 %v419, %v418
      %v421 = vmul.f32 0.5, %v420
      %v422 = vsub.f32 1.5, %v421
      %v423 = vmul.f32 %v418, %v422
      %vm424 = vweird.f32 %v392
      %vm425 = vweird.f32 %v418
      %vm426 = vmor %vm424, %vm425
      %v427 = vsel %vm426, %v418, %v423
      %v428 = vrsqrt.pop %v393
      %v429 = vmul.f32 %v428, %v393
      %v430 = vmul.f32 %v429, %v428
      %v431 = vmul.f32 0.5, %v430
      %v432 = vsub.f32 1.5, %v431
      %v433 = vmul.f32 %v428, %v432
      %vm434 = vweird.f32 %v393
      %vm435 = vweird.f32 %v428
      %vm436 = vmor %vm434, %vm435
      %v437 = vsel %vm436, %v428, %v433
      %v438 = vrsqrt.pop %v394
      %v439 = vmul.f32 %v438, %v394
      %v440 = vmul.f32 %v439, %v438
      %v441 = vmul.f32 0.5, %v440
      %v442 = vsub.f32 1.5, %v441
      %v443 = vmul.f32 %v438, %v442
      %vm444 = vweird.f32 %v394
      %vm445 = vweird.f32 %v438
      %vm446 = vmor %vm444, %vm445
      %v447 = vsel %vm446, %v438, %v443
      %v448 = vrsqrt.pop %v395
      %v449 = vmul.f32 %v448, %v395
      %v450 = vmul.f32 %v449, %v448
      %v451 = vmul.f32 0.5, %v450
      %v452 = vsub.f32 1.5, %v451
      %v453 = vmul.f32 %v448, %v452
      %vm454 = vweird.f32 %v395
      %vm455 = vweird.f32 %v448
      %vm456 = vmor %vm454, %vm455
      %v457 = vsel %vm456, %v448, %v453
      %v458 = vrsqrt.pop %v396
      %v459 = vmul.f32 %v458, %v396
      %v460 = vmul.f32 %v459, %v458
      %v461 = vmul.f32 0.5, %v460
      %v462 = vsub.f32 1.5, %v461
      %v463 = vmul.f32 %v458, %v462
      %vm464 = vweird.f32 %v396
      %vm465 = vweird.f32 %v458
      %vm466 = vmor %vm464, %vm465
      %v467 = vsel %vm466, %v458, %v463
      %v468 = vrsqrt.pop %v397
      %v469 = vmul.f32 %v468, %v397
      %v470 = vmul.f32 %v469, %v468
      %v471 = vmul.f32 0.5, %v470
      %v472 = vsub.f32 1.5, %v471
      %v473 = vmul.f32 %v468, %v472
      %vm474 = vweird.f32 %v397
      %vm475 = vweird.f32 %v468
      %vm476 = vmor %vm474, %vm475
      %v477 = vsel %vm476, %v468, %v473
      %v478 = vsub.f32 %v204, %v350
      %v479 = vsub.f32 %v205, %v351
      %v480 = vsub.f32 %v206, %v352
      %v481 = vsub.f32 %v207, %v353
      %v482 = vsub.f32 %v208, %v354
      %v483 = vsub.f32 %v209, %v355
      %v484 = vsub.f32 %v210, %v356
      %v485 = vsub.f32 %v211, %v357
      %v486 = vsub.f32 %v213, %v350
      %v487 = vsub.f32 %v214, %v351
      %v488 = vsub.f32 %v215, %v352
      %v489 = vsub.f32 %v216, %v353
      %v490 = vsub.f32 %v217, %v354
      %v491 = vsub.f32 %v218, %v355
      %v492 = vsub.f32 %v219, %v356
      %v493 = vsub.f32 %v220, %v357
      %v494 = vld [vmem:[%s1] sm:$0xff]
      %v495 = vld [vmem:[%s2] sm:$0xff]
      %v497 = vsel %vm221, %v486, 0
      %v500 = vsel %vm221, %v487, 0
      %v503 = vsel %vm221, %v488, 0
      %v506 = vsel %vm221, %v489, 0
      %v509 = vsel %vm221, %v490, 0
      %v512 = vsel %vm221, %v491, 0
      %v515 = vsel %vm221, %v492, 0
      %v518 = vsel %vm221, %v493, 0
      %520 = vmatpush.msra.mxu0 0.0
      %521 = vmatpush.msra.mxu0 0.0
      %522 = vmatpush.msra.mxu0 0.0
      %523 = vmatpush.msra.mxu0 0.0
      %524 = vmatpush.msra.mxu0 0.0
      %525 = vmatpush.msra.mxu0 0.0
      %526 = vmatpush.msra.mxu0 0.0
      %527 = vmatpush.msra.mxu0 0.0
      %528 = vmatpush.msra.mxu0 0.0
      %529 = vmatpush.msra.mxu0 0.0
      %530 = vmatpush.msra.mxu0 0.0
      %531 = vmatpush.msra.mxu0 0.0
      %532 = vmatpush.msra.mxu0 0.0
      %533 = vmatpush.msra.mxu0 0.0
      %534 = vmatpush.msra.mxu0 0.0
      %535 = vmatpush.msra.mxu0 %v495
      %536 = vmatmul.f32.gmra.mxu0 %v497
      %v537 = vpop.f32.mrf.mxu0
      %v538 = vadd.f32 0.0, %v537
      %539 = vmatmul.f32.gmra.mxu0 %v500
      %v540 = vpop.f32.mrf.mxu0
      %v541 = vadd.f32 0.0, %v540
      %542 = vmatmul.f32.gmra.mxu0 %v503
      %v543 = vpop.f32.mrf.mxu0
      %v544 = vadd.f32 0.0, %v543
      %545 = vmatmul.f32.gmra.mxu0 %v506
      %v546 = vpop.f32.mrf.mxu0
      %v547 = vadd.f32 0.0, %v546
      %548 = vmatmul.f32.gmra.mxu0 %v509
      %v549 = vpop.f32.mrf.mxu0
      %v550 = vadd.f32 0.0, %v549
      %551 = vmatmul.f32.gmra.mxu0 %v512
      %v552 = vpop.f32.mrf.mxu0
      %v553 = vadd.f32 0.0, %v552
      %554 = vmatmul.f32.gmra.mxu0 %v515
      %v555 = vpop.f32.mrf.mxu0
      %v556 = vadd.f32 0.0, %v555
      %557 = vmatmul.f32.gmra.mxu0 %v518
      %v558 = vpop.f32.mrf.mxu0
      %v559 = vadd.f32 0.0, %v558
      %560 = vdwg.mxu0
      %v562 = vsel %vm221, %v478, 0
      %v565 = vsel %vm221, %v479, 0
      %v568 = vsel %vm221, %v480, 0
      %v571 = vsel %vm221, %v481, 0
      %v574 = vsel %vm221, %v482, 0
      %v577 = vsel %vm221, %v483, 0
      %v580 = vsel %vm221, %v484, 0
      %v583 = vsel %vm221, %v485, 0
      %585 = vmatpush.msra.mxu0 0.0
      %586 = vmatpush.msra.mxu0 0.0
      %587 = vmatpush.msra.mxu0 0.0
      %588 = vmatpush.msra.mxu0 0.0
      %589 = vmatpush.msra.mxu0 0.0
      %590 = vmatpush.msra.mxu0 0.0
      %591 = vmatpush.msra.mxu0 0.0
      %592 = vmatpush.msra.mxu0 0.0
      %593 = vmatpush.msra.mxu0 0.0
      %594 = vmatpush.msra.mxu0 0.0
      %595 = vmatpush.msra.mxu0 0.0
      %596 = vmatpush.msra.mxu0 0.0
      %597 = vmatpush.msra.mxu0 0.0
      %598 = vmatpush.msra.mxu0 0.0
      %599 = vmatpush.msra.mxu0 0.0
      %600 = vmatpush.msra.mxu0 %v494
      %601 = vmatmul.f32.gmra.mxu0 %v562
      %v602 = vpop.f32.mrf.mxu0
      %v603 = vadd.f32 %v538, %v602
      %604 = vmatmul.f32.gmra.mxu0 %v565
      %v605 = vpop.f32.mrf.mxu0
      %v606 = vadd.f32 %v541, %v605
      %607 = vmatmul.f32.gmra.mxu0 %v568
      %v608 = vpop.f32.mrf.mxu0
      %v609 = vadd.f32 %v544, %v608
      %610 = vmatmul.f32.gmra.mxu0 %v571
      %v611 = vpop.f32.mrf.mxu0
      %v612 = vadd.f32 %v547, %v611
      %613 = vmatmul.f32.gmra.mxu0 %v574
      %v614 = vpop.f32.mrf.mxu0
      %v615 = vadd.f32 %v550, %v614
      %616 = vmatmul.f32.gmra.mxu0 %v577
      %v617 = vpop.f32.mrf.mxu0
      %v618 = vadd.f32 %v553, %v617
      %619 = vmatmul.f32.gmra.mxu0 %v580
      %v620 = vpop.f32.mrf.mxu0
      %v621 = vadd.f32 %v556, %v620
      %622 = vmatmul.f32.gmra.mxu0 %v583
      %v623 = vpop.f32.mrf.mxu0
      %v624 = vadd.f32 %v559, %v623
      %625 = vdwg.mxu0
      %v626 = vmul.f32 %v407, %v603
      %v627 = vmul.f32 %v417, %v606
      %v628 = vmul.f32 %v427, %v609
      %v629 = vmul.f32 %v437, %v612
      %v630 = vmul.f32 %v447, %v615
      %v631 = vmul.f32 %v457, %v618
      %v632 = vmul.f32 %v467, %v621
      %v633 = vmul.f32 %v477, %v624
      %v634 = vld [vmem:[%s3] sm:$0x1]
      %v636 = vperm.slane %v634, 0
      %v638 = vadd.f32 %v626, %v636
      %v639 = vadd.f32 %v627, %v636
      %v640 = vadd.f32 %v628, %v636
      %v641 = vadd.f32 %v629, %v636
      %v642 = vadd.f32 %v630, %v636
      %v643 = vadd.f32 %v631, %v636
      %v644 = vadd.f32 %v632, %v636
      %v645 = vadd.f32 %v633, %v636
      %646 = vst.msk [vmem:[%s202] sm:$0xff] %vm221, %v638
      %647 = vst.msk [vmem:[%s202 + $0x8] sm:$0xff] %vm221, %v639
      %648 = vst.msk [vmem:[%s202 + $0x10] sm:$0xff] %vm221, %v640
      %649 = vst.msk [vmem:[%s202 + $0x18] sm:$0xff] %vm221, %v641
      %650 = vst.msk [vmem:[%s202 + $0x20] sm:$0xff] %vm221, %v642
      %651 = vst.msk [vmem:[%s202 + $0x28] sm:$0xff] %vm221, %v643
      %652 = vst.msk [vmem:[%s202 + $0x30] sm:$0xff] %vm221, %v644
      %653 = vst.msk [vmem:[%s202 + $0x38] sm:$0xff] %vm221, %v645
      %s654 = smul.u32 8, %s15
      %p655 = scmp.lt.s32.totalorder %s654, 15
      %s656 = scalar_select %p655, %s654, 15
      %s657 = smul.addr %s656, 8
      %s658 = scalar_lea.vmem %s4, %s657
      // Predicated region
      $region37: #{tpu_custom_call.1} parent=35 // pred_check
        %p659 = pneg %p122
      $region38: #{tpu_custom_call.1} parent=35 // pred_check_branch
        %661 = sbr.rel (%p659) target = $region40
      $region39: #{tpu_custom_call.1} parent=35 // pred_region
        %s662 = smul.u32 8, %s15
      $region40: #{tpu_custom_call.1} parent=35 // pred_fallthru
        _
    $region36: #{tpu_custom_call.1} parent=5 // pred_fallthru
      _
    %p663 = scmp.le.s32.totalorder 2, %s10
    // Predicated region
    $region41: #{tpu_custom_call.1} parent=5 // pred_check
      %p664 = pneg %p663
    $region42: #{tpu_custom_call.1} parent=5 // pred_check_branch
      %666 = sbr.rel (%p664) target = $region44
    $region43: #{tpu_custom_call.1} parent=5 // pred_region
      %s667 = ssub.s32 %s10, 2
      // Predicated region
      $region45: #{tpu_custom_call.1} parent=43 // pred_check
        %p668 = pneg %p128
      $region46: #{tpu_custom_call.1} parent=43 // pred_check_branch
        %670 = sbr.rel (%p668) target = $region48
      $region47: #{tpu_custom_call.1} parent=43 // pred_region
        %s671 = smul.u32 8, %s16
        %p672 = scmp.lt.s32.totalorder %s671, 15
        %s673 = scalar_select %p672, %s671, 15
        %s674 = smul.addr %s673, 8
        %s675 = scalar_lea.vmem %s4, %s674
      $region48: #{tpu_custom_call.1} parent=43 // pred_fallthru
        _
    $region44: #{tpu_custom_call.1} parent=5 // pred_fallthru
      _
  $region6: #{tpu_custom_call.1} parent=0 // loop_footer
    %s14 = sadd.s32 1, %s10
  $region7: #{tpu_custom_call.1} parent=0 // loop_footer_branch
    %9 = sbr.rel target = $region3
  $region8: #{tpu_custom_call.1} parent=0 // loop_exit
    _

// kernel: tpu_custom_call.1
$region0: #{tpu_custom_call.1}
  #allocation0 [shape = 'u32[]', space=smem, size = 0x4, offset = 0x4, fixed_abs, tag = 'smem constant byte address 0x4 - core index']
  #allocation1 [shape = 'u32[72,128]{1,0:T(1,128)}', space=vmem, size = 0x9000, scoped, tag = 'internal scratch']
  %s0 = inlined_call_operand.vmem [shape: f32[16,2,8,8], index: 0, kind: input, shape index: {}]
  %s1 = inlined_call_operand.vmem [shape: f32[8,8], index: 1, kind: input, shape index: {}]
  %s2 = inlined_call_operand.vmem [shape: f32[8,8], index: 2, kind: input, shape index: {}]
  %s3 = inlined_call_operand.vmem [shape: f32[1,8], index: 3, kind: input, shape index: {}]
  %s4 = inlined_call_operand.vmem [shape: f32[16,8,8], index: 4, kind: output, shape index: {}]
  %s5 = sld [smem:[#allocation0]]
  $region49: #{tpu_custom_call.1} parent=0
    _
  %s7 = ssub.s32 1, %s5
  %s8 = scalar_select 0, %s7, %s5
  loop: start=0, step=1, limit=4
  $region2: #{tpu_custom_call.1} parent=0 // loop_pre_header
    _
  $region3: #{tpu_custom_call.1} parent=0 // loop_header
    %s10 = sphi 0, %s14
    %p11 = scmp.ge.s32.totalorder %s10, 4
    %s20 = sphi 0, %s22
    %s23 = sphi 0, %s20
    %s24 = sphi 0, %s23
    %s40 = sphi 0, %s24
    %s44 = sphi 0, %s44
    %s46 = sphi 0, %s44
    %s47 = sphi 0, %s46
    %s61 = sphi 0, %s47
    %s65 = sphi 0, %s65
    %s67 = sphi 0, %s65
    %s68 = sphi 0, %s67
    %s82 = sphi 0, %s68
    %s86 = sphi 0, %s86
    %s88 = sphi 0, %s86
    %s89 = sphi 0, %s88
    %s103 = sphi 0, %s89
    %s109 = sphi 0, %s111
    %s112 = sphi 0, %s109
    %s113 = sphi 0, %s112
    %s129 = sphi 0, %s113
  $region4: #{tpu_custom_call.1} parent=0 // loop_header_branch
    %13 = sbr.rel (%p11) target = $region8
  $region5: #{tpu_custom_call.1} parent=0 // loop_body
    %s15 = ssub.s32 %s10, 1
    %s16 = ssub.s32 %s10, 2
    %s17 = sadd.s32 %s10, 1
    %s18 = ssub.s32 %s10, %s17
    %p19 = scmp.eq.s32.totalorder %s18, 0
    %s21 = sadd.s32 %s20, 1
    %s22 = scalar_select %p19, %s20, %s21
    %p25 = pneg %p19
    %p26 = scmp.eq.s32.totalorder %s10, 1
    %p27 = por %p25, %p26
    %p28 = scmp.ne.s32.totalorder %s20, %s23
    %p29 = scmp.eq.s32.totalorder %s10, 0
    %p30 = por %p28, %p29
    %p31 = scmp.ne.s32.totalorder %s20, %s23
    %p32 = scmp.eq.s32.totalorder %s15, 1
    %p33 = por %p31, %p32
    %p34 = scmp.ne.s32.totalorder %s23, %s24
    %p35 = scmp.eq.s32.totalorder %s15, 0
    %p36 = por %p34, %p35
    %p37 = scmp.ne.s32.totalorder %s23, %s24
    %p38 = scmp.eq.s32.totalorder %s16, 1
    %p39 = por %p37, %p38
    %p41 = scmp.ne.s32.totalorder %s24, %s40
    %p42 = scmp.eq.s32.totalorder %s16, 0
    %p43 = por %p41, %p42
    %s45 = sadd.s32 %s44, 1
    %p48 = scmp.eq.s32.totalorder %s10, 1
    %p49 = scmp.ne.s32.totalorder %s44, %s46
    %p50 = scmp.eq.s32.totalorder %s10, 0
    %p51 = por %p49, %p50
    %p52 = scmp.ne.s32.totalorder %s44, %s46
    %p53 = scmp.eq.s32.totalorder %s15, 1
    %p54 = por %p52, %p53
    %p55 = scmp.ne.s32.totalorder %s46, %s47
    %p56 = scmp.eq.s32.totalorder %s15, 0
    %p57 = por %p55, %p56
    %p58 = scmp.ne.s32.totalorder %s46, %s47
    %p59 = scmp.eq.s32.totalorder %s16, 1
    %p60 = por %p58, %p59
    %p62 = scmp.ne.s32.totalorder %s47, %s61
    %p63 = scmp.eq.s32.totalorder %s16, 0
    %p64 = por %p62, %p63
    %s66 = sadd.s32 %s65, 1
    %p69 = scmp.eq.s32.totalorder %s10, 1
    %p70 = scmp.ne.s32.totalorder %s65, %s67
    %p71 = scmp.eq.s32.totalorder %s10, 0
    %p72 = por %p70, %p71
    %p73 = scmp.ne.s32.totalorder %s65, %s67
    %p74 = scmp.eq.s32.totalorder %s15, 1
    %p75 = por %p73, %p74
    %p76 = scmp.ne.s32.totalorder %s67, %s68
    %p77 = scmp.eq.s32.totalorder %s15, 0
    %p78 = por %p76, %p77
    %p79 = scmp.ne.s32.totalorder %s67, %s68
    %p80 = scmp.eq.s32.totalorder %s16, 1
    %p81 = por %p79, %p80
    %p83 = scmp.ne.s32.totalorder %s68, %s82
    %p84 = scmp.eq.s32.totalorder %s16, 0
    %p85 = por %p83, %p84
    %s87 = sadd.s32 %s86, 1
    %p90 = scmp.eq.s32.totalorder %s10, 1
    %p91 = scmp.ne.s32.totalorder %s86, %s88
    %p92 = scmp.eq.s32.totalorder %s10, 0
    %p93 = por %p91, %p92
    %p94 = scmp.ne.s32.totalorder %s86, %s88
    %p95 = scmp.eq.s32.totalorder %s15, 1
    %p96 = por %p94, %p95
    %p97 = scmp.ne.s32.totalorder %s88, %s89
    %p98 = scmp.eq.s32.totalorder %s15, 0
    %p99 = por %p97, %p98
    %p100 = scmp.ne.s32.totalorder %s88, %s89
    %p101 = scmp.eq.s32.totalorder %s16, 1
    %p102 = por %p100, %p101
    %p104 = scmp.ne.s32.totalorder %s89, %s103
    %p105 = scmp.eq.s32.totalorder %s16, 0
    %p106 = por %p104, %p105
    %s107 = ssub.s32 %s10, %s17
    %p108 = scmp.eq.s32.totalorder %s107, 0
    %s110 = sadd.s32 %s109, 1
    %s111 = scalar_select %p108, %s109, %s110
    %p114 = pneg %p108
    %p115 = scmp.eq.s32.totalorder %s10, 1
    %p116 = por %p114, %p115
    %p117 = scmp.ne.s32.totalorder %s109, %s112
    %p118 = scmp.eq.s32.totalorder %s10, 0
    %p119 = por %p117, %p118
    %p120 = scmp.ne.s32.totalorder %s109, %s112
    %p121 = scmp.eq.s32.totalorder %s15, 1
    %p122 = por %p120, %p121
    %p123 = scmp.ne.s32.totalorder %s112, %s113
    %p124 = scmp.eq.s32.totalorder %s15, 0
    %p125 = por %p123, %p124
    %p126 = scmp.ne.s32.totalorder %s112, %s113
    %p127 = scmp.eq.s32.totalorder %s16, 1
    %p128 = por %p126, %p127
    %p130 = scmp.ne.s32.totalorder %s113, %s129
    %p131 = scmp.eq.s32.totalorder %s16, 0
    %p132 = por %p130, %p131
    %p133 = scmp.le.s32.totalorder 1, %s10
    %p134 = scmp.lt.s32.totalorder %s10, 3
    %p135 = pnand %p133, %p134
    %p136 = pneg %p135
    // Predicated region
    $region9: #{tpu_custom_call.1} parent=5 // pred_check
      _
    $region10: #{tpu_custom_call.1} parent=5 // pred_check_branch
      %138 = sbr.rel (%p135) target = $region12
    $region11: #{tpu_custom_call.1} parent=5 // pred_region
      %s139 = ssub.s32 %s10, 1
      // Predicated region
      $region13: #{tpu_custom_call.1} parent=11 // pred_check
        %p140 = pneg %p57
      $region14: #{tpu_custom_call.1} parent=11 // pred_check_branch
        %142 = sbr.rel (%p140) target = $region16
      $region15: #{tpu_custom_call.1} parent=11 // pred_region
        _
      $region16: #{tpu_custom_call.1} parent=11 // pred_fallthru
        _
      // Predicated region
      $region17: #{tpu_custom_call.1} parent=11 // pred_check
        %p143 = pneg %p78
      $region18: #{tpu_custom_call.1} parent=11 // pred_check_branch
        %145 = sbr.rel (%p143) target = $region20
      $region19: #{tpu_custom_call.1} parent=11 // pred_region
        _
      $region20: #{tpu_custom_call.1} parent=11 // pred_fallthru
        _
      // Predicated region
      $region21: #{tpu_custom_call.1} parent=11 // pred_check
        %p146 = pneg %p99
      $region22: #{tpu_custom_call.1} parent=11 // pred_check_branch
        %148 = sbr.rel (%p146) target = $region24
      $region23: #{tpu_custom_call.1} parent=11 // pred_region
        _
      $region24: #{tpu_custom_call.1} parent=11 // pred_fallthru
        _
    $region12: #{tpu_custom_call.1} parent=5 // pred_fallthru
      _
    %p149 = scmp.lt.s32.totalorder %s10, 2
    // Predicated region
    $region25: #{tpu_custom_call.1} parent=5 // pred_check
      %p150 = pneg %p149
    $region26: #{tpu_custom_call.1} parent=5 // pred_check_branch
      %152 = sbr.rel (%p150) target = $region28
    $region27: #{tpu_custom_call.1} parent=5 // pred_region
      // Predicated region
      $region29: #{tpu_custom_call.1} parent=27 // pred_check
        %p153 = pneg %p30
      $region30: #{tpu_custom_call.1} parent=27 // pred_check_branch
        %155 = sbr.rel (%p153) target = $region32
      $region31: #{tpu_custom_call.1} parent=27 // pred_region
        %s156 = smul.u32 8, %s10
        %p157 = scmp.lt.s32.totalorder %s156, 15
        %s158 = scalar_select %p157, %s156, 15
        %s159 = smul.addr %s158, 2
        %s160 = smul.addr %s159, 8
        %s161 = scalar_lea.vmem %s0, %s160
        %s162 = smul.u32 8, %s10
      $region32: #{tpu_custom_call.1} parent=27 // pred_fallthru
        _
    $region28: #{tpu_custom_call.1} parent=5 // pred_fallthru
      _
    %p163 = scmp.le.s32.totalorder 1, %s10
    %p164 = scmp.lt.s32.totalorder %s10, 3
    %p165 = pnand %p163, %p164
    %p166 = pneg %p165
    // Predicated region
    $region33: #{tpu_custom_call.1} parent=5 // pred_check
      _
    $region34: #{tpu_custom_call.1} parent=5 // pred_check_branch
      %168 = sbr.rel (%p165) target = $region36
    $region35: #{tpu_custom_call.1} parent=5 // pred_region
      %s169 = ssub.s32 %s10, 1
      %s170 = smul.u32 8, %s15
      %p171 = scmp.lt.s32.totalorder %s170, 15
      %s172 = scalar_select %p171, %s170, 15
      %s173 = smul.addr %s172, 2
      %s174 = smul.addr %s173, 8
      %s175 = scalar_lea.vmem %s0, %s174
      %p176 = pneg %p36
      %p177 = pneg %p33
      %p178 = pneg %p57
      %p179 = pneg %p54
      %p180 = pneg %p78
      %p181 = pneg %p75
      %p182 = pneg %p99
      %p183 = pneg %p96
      %p184 = pneg %p125
      %p185 = pneg %p122
      %s186 = smul.u32 8, %s15
      %p187 = scmp.lt.s32.totalorder %s186, 15
      %s188 = scalar_select %p187, %s186, 15
      %s189 = smul.addr %s188, 8
      %s190 = scalar_lea.vmem %s4, %s189
      %s191 = smul.u32 8, %s15
      %p192 = scmp.lt.s32.totalorder %s191, 15
      %s193 = scalar_select %p192, %s191, 15
      %s194 = smul.addr %s193, 2
      %s195 = smul.addr %s194, 8
      %s196 = scalar_lea.vmem %s0, %s195
      %s197 = smul.u32 8, %s15
      %s198 = smul.u32 8, %s15
      %p199 = scmp.lt.s32.totalorder %s198, 15
      %s200 = scalar_select %p199, %s198, 15
      %s201 = smul.addr %s200, 8
      %s202 = scalar_lea.vmem %s4, %s201
      %s203 = smul.u32 8, %s15
      %v204 = vld [vmem:[%s196] sm:$0xff]
      %v205 = vld [vmem:[%s196 + $0x10] sm:$0xff]
      %v206 = vld [vmem:[%s196 + $0x20] sm:$0xff]
      %v207 = vld [vmem:[%s196 + $0x30] sm:$0xff]
      %v208 = vld [vmem:[%s196 + $0x40] sm:$0xff]
      %v209 = vld [vmem:[%s196 + $0x50] sm:$0xff]
      %v210 = vld [vmem:[%s196 + $0x60] sm:$0xff]
      %v211 = vld [vmem:[%s196 + $0x70] sm:$0xff]
      %s212 = scalar_lea.vmem %s196, 8
      %v213 = vld [vmem:[%s212] sm:$0xff]
      %v214 = vld [vmem:[%s212 + $0x10] sm:$0xff]
      %v215 = vld [vmem:[%s212 + $0x20] sm:$0xff]
      %v216 = vld [vmem:[%s212 + $0x30] sm:$0xff]
      %v217 = vld [vmem:[%s212 + $0x40] sm:$0xff]
      %v218 = vld [vmem:[%s212 + $0x50] sm:$0xff]
      %v219 = vld [vmem:[%s212 + $0x60] sm:$0xff]
      %v220 = vld [vmem:[%s212 + $0x70] sm:$0xff]
      %vm221 = vcmask 64512
      %v222 = vsel %vm221, %v204, 0.0
      %223 = vadd.xlane.f32.xlu0 %v222
      %v224 = vpop.xlane.xlu0 %223
      %v225 = vsel %vm221, %v205, 0.0
      %226 = vadd.xlane.f32.xlu0 %v225
      %v227 = vpop.xlane.xlu0 %226
      %v228 = vsel %vm221, %v206, 0.0
      %229 = vadd.xlane.f32.xlu0 %v228
      %v230 = vpop.xlane.xlu0 %229
      %v231 = vsel %vm221, %v207, 0.0
      %232 = vadd.xlane.f32.xlu0 %v231
      %v233 = vpop.xlane.xlu0 %232
      %v234 = vsel %vm221, %v208, 0.0
      %235 = vadd.xlane.f32.xlu0 %v234
      %v236 = vpop.xlane.xlu0 %235
      %v237 = vsel %vm221, %v209, 0.0
      %238 = vadd.xlane.f32.xlu0 %v237
      %v239 = vpop.xlane.xlu0 %238
      %v240 = vsel %vm221, %v210, 0.0
      %241 = vadd.xlane.f32.xlu0 %v240
      %v242 = vpop.xlane.xlu0 %241
      %v243 = vsel %vm221, %v211, 0.0
      %244 = vadd.xlane.f32.xlu0 %v243
      %v245 = vpop.xlane.xlu0 %244
      %v246 = vsel %vm221, %v213, 0.0
      %247 = vadd.xlane.f32.xlu0 %v246
      %v248 = vpop.xlane.xlu0 %247
      %v249 = vsel %vm221, %v214, 0.0
      %250 = vadd.xlane.f32.xlu0 %v249
      %v251 = vpop.xlane.xlu0 %250
      %v252 = vsel %vm221, %v215, 0.0
      %253 = vadd.xlane.f32.xlu0 %v252
      %v254 = vpop.xlane.xlu0 %253
      %v255 = vsel %vm221, %v216, 0.0
      %256 = vadd.xlane.f32.xlu0 %v255
      %v257 = vpop.xlane.xlu0 %256
      %v258 = vsel %vm221, %v217, 0.0
      %259 = vadd.xlane.f32.xlu0 %v258
      %v260 = vpop.xlane.xlu0 %259
      %v261 = vsel %vm221, %v218, 0.0
      %262 = vadd.xlane.f32.xlu0 %v261
      %v263 = vpop.xlane.xlu0 %262
      %v264 = vsel %vm221, %v219, 0.0
      %265 = vadd.xlane.f32.xlu0 %v264
      %v266 = vpop.xlane.xlu0 %265
      %v267 = vsel %vm221, %v220, 0.0
      %268 = vadd.xlane.f32.xlu0 %v267
      %v269 = vpop.xlane.xlu0 %268
      %v270 = vadd.f32 %v224, %v248
      %v271 = vadd.f32 %v227, %v251
      %v272 = vadd.f32 %v230, %v254
      %v273 = vadd.f32 %v233, %v257
      %v274 = vadd.f32 %v236, %v260
      %v275 = vadd.f32 %v239, %v263
      %v276 = vadd.f32 %v242, %v266
      %v277 = vadd.f32 %v245, %v269
      %v278 = vmul.f32 %v204, %v204
      %v279 = vmul.f32 %v205, %v205
      %v280 = vmul.f32 %v206, %v206
      %v281 = vmul.f32 %v207, %v207
      %v282 = vmul.f32 %v208, %v208
      %v283 = vmul.f32 %v209, %v209
      %v284 = vmul.f32 %v210, %v210
      %v285 = vmul.f32 %v211, %v211
      %v286 = vsel %vm221, %v278, 0.0
      %287 = vadd.xlane.f32.xlu0 %v286
      %v288 = vpop.xlane.xlu0 %287
      %v289 = vsel %vm221, %v279, 0.0
      %290 = vadd.xlane.f32.xlu0 %v289
      %v291 = vpop.xlane.xlu0 %290
      %v292 = vsel %vm221, %v280, 0.0
      %293 = vadd.xlane.f32.xlu0 %v292
      %v294 = vpop.xlane.xlu0 %293
      %v295 = vsel %vm221, %v281, 0.0
      %296 = vadd.xlane.f32.xlu0 %v295
      %v297 = vpop.xlane.xlu0 %296
      %v298 = vsel %vm221, %v282, 0.0
      %299 = vadd.xlane.f32.xlu0 %v298
      %v300 = vpop.xlane.xlu0 %299
      %v301 = vsel %vm221, %v283, 0.0
      %302 = vadd.xlane.f32.xlu0 %v301
      %v303 = vpop.xlane.xlu0 %302
      %v304 = vsel %vm221, %v284, 0.0
      %305 = vadd.xlane.f32.xlu0 %v304
      %v306 = vpop.xlane.xlu0 %305
      %v307 = vsel %vm221, %v285, 0.0
      %308 = vadd.xlane.f32.xlu0 %v307
      %v309 = vpop.xlane.xlu0 %308
      %v310 = vmul.f32 %v213, %v213
      %v311 = vmul.f32 %v214, %v214
      %v312 = vmul.f32 %v215, %v215
      %v313 = vmul.f32 %v216, %v216
      %v314 = vmul.f32 %v217, %v217
      %v315 = vmul.f32 %v218, %v218
      %v316 = vmul.f32 %v219, %v219
      %v317 = vmul.f32 %v220, %v220
      %v318 = vsel %vm221, %v310, 0.0
      %319 = vadd.xlane.f32.xlu0 %v318
      %v320 = vpop.xlane.xlu0 %319
      %v321 = vsel %vm221, %v311, 0.0
      %322 = vadd.xlane.f32.xlu0 %v321
      %v323 = vpop.xlane.xlu0 %322
      %v324 = vsel %vm221, %v312, 0.0
      %325 = vadd.xlane.f32.xlu0 %v324
      %v326 = vpop.xlane.xlu0 %325
      %v327 = vsel %vm221, %v313, 0.0
      %328 = vadd.xlane.f32.xlu0 %v327
      %v329 = vpop.xlane.xlu0 %328
      %v330 = vsel %vm221, %v314, 0.0
      %331 = vadd.xlane.f32.xlu0 %v330
      %v332 = vpop.xlane.xlu0 %331
      %v333 = vsel %vm221, %v315, 0.0
      %334 = vadd.xlane.f32.xlu0 %v333
      %v335 = vpop.xlane.xlu0 %334
      %v336 = vsel %vm221, %v316, 0.0
      %337 = vadd.xlane.f32.xlu0 %v336
      %v338 = vpop.xlane.xlu0 %337
      %v339 = vsel %vm221, %v317, 0.0
      %340 = vadd.xlane.f32.xlu0 %v339
      %v341 = vpop.xlane.xlu0 %340
      %v342 = vadd.f32 %v288, %v320
      %v343 = vadd.f32 %v291, %v323
      %v344 = vadd.f32 %v294, %v326
      %v345 = vadd.f32 %v297, %v329
      %v346 = vadd.f32 %v300, %v332
      %v347 = vadd.f32 %v303, %v335
      %v348 = vadd.f32 %v306, %v338
      %v349 = vadd.f32 %v309, %v341
      %v350 = vmul.f32 %v270, 0.0625
      %v351 = vmul.f32 %v271, 0.0625
      %v352 = vmul.f32 %v272, 0.0625
      %v353 = vmul.f32 %v273, 0.0625
      %v354 = vmul.f32 %v274, 0.0625
      %v355 = vmul.f32 %v275, 0.0625
      %v356 = vmul.f32 %v276, 0.0625
      %v357 = vmul.f32 %v277, 0.0625
      %v358 = vmul.f32 %v342, 0.0625
      %v359 = vmul.f32 %v343, 0.0625
      %v360 = vmul.f32 %v344, 0.0625
      %v361 = vmul.f32 %v345, 0.0625
      %v362 = vmul.f32 %v346, 0.0625
      %v363 = vmul.f32 %v347, 0.0625
      %v364 = vmul.f32 %v348, 0.0625
      %v365 = vmul.f32 %v349, 0.0625
      %v366 = vmul.f32 %v350, %v350
      %v367 = vmul.f32 %v351, %v351
      %v368 = vmul.f32 %v352, %v352
      %v369 = vmul.f32 %v353, %v353
      %v370 = vmul.f32 %v354, %v354
      %v371 = vmul.f32 %v355, %v355
      %v372 = vmul.f32 %v356, %v356
      %v373 = vmul.f32 %v357, %v357
      %v374 = vsub.f32 %v358, %v366
      %v375 = vsub.f32 %v359, %v367
      %v376 = vsub.f32 %v360, %v368
      %v377 = vsub.f32 %v361, %v369
      %v378 = vsub.f32 %v362, %v370
      %v379 = vsub.f32 %v363, %v371
      %v380 = vsub.f32 %v364, %v372
      %v381 = vsub.f32 %v365, %v373
      %v382 = vmax.f32 %v374, 0.0
      %v383 = vmax.f32 %v375, 0.0
      %v384 = vmax.f32 %v376, 0.0
      %v385 = vmax.f32 %v377, 0.0
      %v386 = vmax.f32 %v378, 0.0
      %v387 = vmax.f32 %v379, 0.0
      %v388 = vmax.f32 %v380, 0.0
      %v389 = vmax.f32 %v381, 0.0
      %v390 = vadd.f32 %v382, 1e-05
      %v391 = vadd.f32 %v383, 1e-05
      %v392 = vadd.f32 %v384, 1e-05
      %v393 = vadd.f32 %v385, 1e-05
      %v394 = vadd.f32 %v386, 1e-05
      %v395 = vadd.f32 %v387, 1e-05
      %v396 = vadd.f32 %v388, 1e-05
      %v397 = vadd.f32 %v389, 1e-05
      %v398 = vrsqrt.pop %v390
      %v399 = vmul.f32 %v398, %v390
      %v400 = vmul.f32 %v399, %v398
      %v401 = vmul.f32 0.5, %v400
      %v402 = vsub.f32 1.5, %v401
      %v403 = vmul.f32 %v398, %v402
      %vm404 = vweird.f32 %v390
      %vm405 = vweird.f32 %v398
      %vm406 = vmor %vm404, %vm405
      %v407 = vsel %vm406, %v398, %v403
      %v408 = vrsqrt.pop %v391
      %v409 = vmul.f32 %v408, %v391
      %v410 = vmul.f32 %v409, %v408
      %v411 = vmul.f32 0.5, %v410
      %v412 = vsub.f32 1.5, %v411
      %v413 = vmul.f32 %v408, %v412
      %vm414 = vweird.f32 %v391
      %vm415 = vweird.f32 %v408
      %vm416 = vmor %vm414, %vm415
      %v417 = vsel %vm416, %v408, %v413
      %v418 = vrsqrt.pop %v392
      %v419 = vmul.f32 %v418, %v392
      %v420 = vmul.f32 %v419, %v418
      %v421 = vmul.f32 0.5, %v420
      %v422 = vsub.f32 1.5, %v421
      %v423 = vmul.f32 %v418, %v422
      %vm424 = vweird.f32 %v392
      %vm425 = vweird.f32 %v418
      %vm426 = vmor %vm424, %vm425
      %v427 = vsel %vm426, %v418, %v423
      %v428 = vrsqrt.pop %v393
      %v429 = vmul.f32 %v428, %v393
      %v430 = vmul.f32 %v429, %v428
      %v431 = vmul.f32 0.5, %v430
      %v432 = vsub.f32 1.5, %v431
      %v433 = vmul.f32 %v428, %v432
      %vm434 = vweird.f32 %v393
      %vm435 = vweird.f32 %v428
      %vm436 = vmor %vm434, %vm435
      %v437 = vsel %vm436, %v428, %v433
      %v438 = vrsqrt.pop %v394
      %v439 = vmul.f32 %v438, %v394
      %v440 = vmul.f32 %v439, %v438
      %v441 = vmul.f32 0.5, %v440
      %v442 = vsub.f32 1.5, %v441
      %v443 = vmul.f32 %v438, %v442
      %vm444 = vweird.f32 %v394
      %vm445 = vweird.f32 %v438
      %vm446 = vmor %vm444, %vm445
      %v447 = vsel %vm446, %v438, %v443
      %v448 = vrsqrt.pop %v395
      %v449 = vmul.f32 %v448, %v395
      %v450 = vmul.f32 %v449, %v448
      %v451 = vmul.f32 0.5, %v450
      %v452 = vsub.f32 1.5, %v451
      %v453 = vmul.f32 %v448, %v452
      %vm454 = vweird.f32 %v395
      %vm455 = vweird.f32 %v448
      %vm456 = vmor %vm454, %vm455
      %v457 = vsel %vm456, %v448, %v453
      %v458 = vrsqrt.pop %v396
      %v459 = vmul.f32 %v458, %v396
      %v460 = vmul.f32 %v459, %v458
      %v461 = vmul.f32 0.5, %v460
      %v462 = vsub.f32 1.5, %v461
      %v463 = vmul.f32 %v458, %v462
      %vm464 = vweird.f32 %v396
      %vm465 = vweird.f32 %v458
      %vm466 = vmor %vm464, %vm465
      %v467 = vsel %vm466, %v458, %v463
      %v468 = vrsqrt.pop %v397
      %v469 = vmul.f32 %v468, %v397
      %v470 = vmul.f32 %v469, %v468
      %v471 = vmul.f32 0.5, %v470
      %v472 = vsub.f32 1.5, %v471
      %v473 = vmul.f32 %v468, %v472
      %vm474 = vweird.f32 %v397
      %vm475 = vweird.f32 %v468
      %vm476 = vmor %vm474, %vm475
      %v477 = vsel %vm476, %v468, %v473
      %v478 = vsub.f32 %v204, %v350
      %v479 = vsub.f32 %v205, %v351
      %v480 = vsub.f32 %v206, %v352
      %v481 = vsub.f32 %v207, %v353
      %v482 = vsub.f32 %v208, %v354
      %v483 = vsub.f32 %v209, %v355
      %v484 = vsub.f32 %v210, %v356
      %v485 = vsub.f32 %v211, %v357
      %v486 = vsub.f32 %v213, %v350
      %v487 = vsub.f32 %v214, %v351
      %v488 = vsub.f32 %v215, %v352
      %v489 = vsub.f32 %v216, %v353
      %v490 = vsub.f32 %v217, %v354
      %v491 = vsub.f32 %v218, %v355
      %v492 = vsub.f32 %v219, %v356
      %v493 = vsub.f32 %v220, %v357
      %v494 = vld [vmem:[%s1] sm:$0xff]
      %v495 = vld [vmem:[%s2] sm:$0xff]
      %v497 = vsel %vm221, %v486, 0
      %v500 = vsel %vm221, %v487, 0
      %v503 = vsel %vm221, %v488, 0
      %v506 = vsel %vm221, %v489, 0
      %v509 = vsel %vm221, %v490, 0
      %v512 = vsel %vm221, %v491, 0
      %v515 = vsel %vm221, %v492, 0
      %v518 = vsel %vm221, %v493, 0
      %520 = vmatpush.msra.mxu0 0.0
      %521 = vmatpush.msra.mxu0 0.0
      %522 = vmatpush.msra.mxu0 0.0
      %523 = vmatpush.msra.mxu0 0.0
      %524 = vmatpush.msra.mxu0 0.0
      %525 = vmatpush.msra.mxu0 0.0
      %526 = vmatpush.msra.mxu0 0.0
      %527 = vmatpush.msra.mxu0 0.0
      %528 = vmatpush.msra.mxu0 0.0
      %529 = vmatpush.msra.mxu0 0.0
      %530 = vmatpush.msra.mxu0 0.0
      %531 = vmatpush.msra.mxu0 0.0
      %532 = vmatpush.msra.mxu0 0.0
      %533 = vmatpush.msra.mxu0 0.0
      %534 = vmatpush.msra.mxu0 0.0
      %535 = vmatpush.msra.mxu0 %v495
      %536 = vmatmul.f32.gmra.mxu0 %v497
      %v537 = vpop.f32.mrf.mxu0
      %v538 = vadd.f32 0.0, %v537
      %539 = vmatmul.f32.gmra.mxu0 %v500
      %v540 = vpop.f32.mrf.mxu0
      %v541 = vadd.f32 0.0, %v540
      %542 = vmatmul.f32.gmra.mxu0 %v503
      %v543 = vpop.f32.mrf.mxu0
      %v544 = vadd.f32 0.0, %v543
      %545 = vmatmul.f32.gmra.mxu0 %v506
      %v546 = vpop.f32.mrf.mxu0
      %v547 = vadd.f32 0.0, %v546
      %548 = vmatmul.f32.gmra.mxu0 %v509
      %v549 = vpop.f32.mrf.mxu0
      %v550 = vadd.f32 0.0, %v549
      %551 = vmatmul.f32.gmra.mxu0 %v512
      %v552 = vpop.f32.mrf.mxu0
      %v553 = vadd.f32 0.0, %v552
      %554 = vmatmul.f32.gmra.mxu0 %v515
      %v555 = vpop.f32.mrf.mxu0
      %v556 = vadd.f32 0.0, %v555
      %557 = vmatmul.f32.gmra.mxu0 %v518
      %v558 = vpop.f32.mrf.mxu0
      %v559 = vadd.f32 0.0, %v558
      %560 = vdwg.mxu0
      %v562 = vsel %vm221, %v478, 0
      %v565 = vsel %vm221, %v479, 0
      %v568 = vsel %vm221, %v480, 0
      %v571 = vsel %vm221, %v481, 0
      %v574 = vsel %vm221, %v482, 0
      %v577 = vsel %vm221, %v483, 0
      %v580 = vsel %vm221, %v484, 0
      %v583 = vsel %vm221, %v485, 0
      %585 = vmatpush.msra.mxu0 0.0
      %586 = vmatpush.msra.mxu0 0.0
      %587 = vmatpush.msra.mxu0 0.0
      %588 = vmatpush.msra.mxu0 0.0
      %589 = vmatpush.msra.mxu0 0.0
      %590 = vmatpush.msra.mxu0 0.0
      %591 = vmatpush.msra.mxu0 0.0
      %592 = vmatpush.msra.mxu0 0.0
      %593 = vmatpush.msra.mxu0 0.0
      %594 = vmatpush.msra.mxu0 0.0
      %595 = vmatpush.msra.mxu0 0.0
      %596 = vmatpush.msra.mxu0 0.0
      %597 = vmatpush.msra.mxu0 0.0
      %598 = vmatpush.msra.mxu0 0.0
      %599 = vmatpush.msra.mxu0 0.0
      %600 = vmatpush.msra.mxu0 %v494
      %601 = vmatmul.f32.gmra.mxu0 %v562
      %v602 = vpop.f32.mrf.mxu0
      %v603 = vadd.f32 %v538, %v602
      %604 = vmatmul.f32.gmra.mxu0 %v565
      %v605 = vpop.f32.mrf.mxu0
      %v606 = vadd.f32 %v541, %v605
      %607 = vmatmul.f32.gmra.mxu0 %v568
      %v608 = vpop.f32.mrf.mxu0
      %v609 = vadd.f32 %v544, %v608
      %610 = vmatmul.f32.gmra.mxu0 %v571
      %v611 = vpop.f32.mrf.mxu0
      %v612 = vadd.f32 %v547, %v611
      %613 = vmatmul.f32.gmra.mxu0 %v574
      %v614 = vpop.f32.mrf.mxu0
      %v615 = vadd.f32 %v550, %v614
      %616 = vmatmul.f32.gmra.mxu0 %v577
      %v617 = vpop.f32.mrf.mxu0
      %v618 = vadd.f32 %v553, %v617
      %619 = vmatmul.f32.gmra.mxu0 %v580
      %v620 = vpop.f32.mrf.mxu0
      %v621 = vadd.f32 %v556, %v620
      %622 = vmatmul.f32.gmra.mxu0 %v583
      %v623 = vpop.f32.mrf.mxu0
      %v624 = vadd.f32 %v559, %v623
      %625 = vdwg.mxu0
      %v626 = vmul.f32 %v407, %v603
      %v627 = vmul.f32 %v417, %v606
      %v628 = vmul.f32 %v427, %v609
      %v629 = vmul.f32 %v437, %v612
      %v630 = vmul.f32 %v447, %v615
      %v631 = vmul.f32 %v457, %v618
      %v632 = vmul.f32 %v467, %v621
      %v633 = vmul.f32 %v477, %v624
      %v634 = vld [vmem:[%s3] sm:$0x1]
      %v636 = vperm.slane %v634, 0
      %v638 = vadd.f32 %v626, %v636
      %v639 = vadd.f32 %v627, %v636
      %v640 = vadd.f32 %v628, %v636
      %v641 = vadd.f32 %v629, %v636
      %v642 = vadd.f32 %v630, %v636
      %v643 = vadd.f32 %v631, %v636
      %v644 = vadd.f32 %v632, %v636
      %v645 = vadd.f32 %v633, %v636
      %646 = vst.msk [vmem:[%s202] sm:$0xff] %vm221, %v638
      %647 = vst.msk [vmem:[%s202 + $0x8] sm:$0xff] %vm221, %v639
      %648 = vst.msk [vmem:[%s202 + $0x10] sm:$0xff] %vm221, %v640
      %649 = vst.msk [vmem:[%s202 + $0x18] sm:$0xff] %vm221, %v641
      %650 = vst.msk [vmem:[%s202 + $0x20] sm:$0xff] %vm221, %v642
      %651 = vst.msk [vmem:[%s202 + $0x28] sm:$0xff] %vm221, %v643
      %652 = vst.msk [vmem:[%s202 + $0x30] sm:$0xff] %vm221, %v644
      %653 = vst.msk [vmem:[%s202 + $0x38] sm:$0xff] %vm221, %v645
      %s654 = smul.u32 8, %s15
      %p655 = scmp.lt.s32.totalorder %s654, 15
      %s656 = scalar_select %p655, %s654, 15
      %s657 = smul.addr %s656, 8
      %s658 = scalar_lea.vmem %s4, %s657
      // Predicated region
      $region37: #{tpu_custom_call.1} parent=35 // pred_check
        %p659 = pneg %p122
      $region38: #{tpu_custom_call.1} parent=35 // pred_check_branch
        %661 = sbr.rel (%p659) target = $region40
      $region39: #{tpu_custom_call.1} parent=35 // pred_region
        %s662 = smul.u32 8, %s15
      $region40: #{tpu_custom_call.1} parent=35 // pred_fallthru
        _
    $region36: #{tpu_custom_call.1} parent=5 // pred_fallthru
      _
    %p663 = scmp.le.s32.totalorder 2, %s10
    // Predicated region
    $region41: #{tpu_custom_call.1} parent=5 // pred_check
      %p664 = pneg %p663
    $region42: #{tpu_custom_call.1} parent=5 // pred_check_branch
      %666 = sbr.rel (%p664) target = $region44
    $region43: #{tpu_custom_call.1} parent=5 // pred_region
      %s667 = ssub.s32 %s10, 2
      // Predicated region
      $region45: #{tpu_custom_call.1} parent=43 // pred_check
        %p668 = pneg %p128
      $region46: #{tpu_custom_call.1} parent=43 // pred_check_branch
        %670 = sbr.rel (%p668) target = $region48
      $region47: #{tpu_custom_call.1} parent=43 // pred_region
        %s671 = smul.u32 8, %s16
        %p672 = scmp.lt.s32.totalorder %s671, 15
        %s673 = scalar_select %p672, %s671, 15
        %s674 = smul.addr %s673, 8
        %s675 = scalar_lea.vmem %s4, %s674
      $region48: #{tpu_custom_call.1} parent=43 // pred_fallthru
        _
    $region44: #{tpu_custom_call.1} parent=5 // pred_fallthru
      _
  $region6: #{tpu_custom_call.1} parent=0 // loop_footer
    %s14 = sadd.s32 1, %s10
  $region7: #{tpu_custom_call.1} parent=0 // loop_footer_branch
    %9 = sbr.rel target = $region3
  $region8: #{tpu_custom_call.1} parent=0 // loop_exit
    _

</llo_original>
